<compile_context>
chip_gen: v7x
topology: tpu7x:2x2x1
jax: 0.10.0
libtpu: 0.0.40
codegen_flags: <defaults>
</compile_context>

<pallas_src>
import math

import numpy as np

import jax
import jax.numpy as jnp
from jax.experimental import pallas as pl
from jax.experimental.pallas import tpu as pltpu


def _round_up(v, m):
    return ((v + m - 1) // m) * m


# ----------------------- host-side weight restructuring --------------------- #
def _conv_xpool_matrix(w, W, k, pad):
    """w: (k, k, Cin, Cout) -> (k*Cin*W, Cout*W) Toeplitz matrix.

    For each row tap ky it folds: the kx tap shift, the Cin contraction, and the
    x-direction of AvgPool2d(k, stride=1, padding=pad, count_include_pad=True)
    (1/k^2 included).  Lane order is (c*W + x) on both sides.  The k row taps are
    stacked along the contraction (row) axis, matching the kernel's lane-concat of
    the k shifted activation taps."""
    _, _, cin, cout = w.shape
    B = np.zeros((k, cin * W, cout * W), np.float64)
    inv = 1.0 / float(k * k)
    ci_base = np.arange(cin) * W
    co_base = np.arange(cout) * W
    for ky in range(k):
        for xo in range(W):                      # pooled-output column
            for px in range(k):
                xp = xo + px - pad               # conv-output column feeding the pool
                if not (0 <= xp < W):
                    continue                     # pool zero padding (count_include_pad)
                for kx in range(k):
                    xi = xp + kx - pad           # input column
                    if 0 <= xi < W:              # conv zero padding
                        B[ky][np.ix_(ci_base + xi, co_base + xo)] += inv * w[ky, kx]
    return B.reshape(k * cin * W, cout * W)


def _xpool_bias_row(b, W, k, pad):
    """Conv bias after the x-direction of the pool: spatially varying in x because
    count_include_pad=True attenuates it near the left/right borders."""
    cout = b.size
    nx = np.array([sum(1 for px in range(k) if 0 <= xo + px - pad < W)
                   for xo in range(W)], np.float64)
    return (b.reshape(cout, 1) * (nx / float(k * k))).reshape(1, cout * W)


def prepare_kernel_params(params, *, num_layer, channel, kernal, pad, dim_in):
    """One-time host-side restructuring into MXU-friendly matrices.  Matmul operands
    are bf16 (MXU-native); biases stay f32."""
    assert 2 * pad == kernal - 1, "module's Linear sizing implies 'same' spatial size"
    H = W = dim_in
    flat = []
    for (w, b) in params["convs"]:
        w = np.asarray(w, np.float64)
        b = np.asarray(b, np.float64).reshape(-1)
        B = _conv_xpool_matrix(w, W, kernal, pad)
        br = _xpool_bias_row(b, W, kernal, pad)
        flat += [jnp.asarray(B, jnp.bfloat16), jnp.asarray(br, jnp.float32)]

    w1, b1, w2, b2 = [np.asarray(a, np.float64) for a in params["mlp"]]
    c_last = channel[num_layer]
    d1, d2 = w1.shape[1], w2.shape[1]
    d1p, d2p = _round_up(d1, 128), _round_up(d2, 128)
    # Fold PyTorch's NCHW flatten (index c*H*W + y*W + x) into w1 so the kernel's
    # row-major flatten of its (H, c*W + x) activation feeds it directly; pad the
    # hidden/output dims to 128 lanes so all matmuls / stores are lane-dense.
    w1s = w1.reshape(c_last, H, W, d1).transpose(1, 0, 2, 3).reshape(H * c_last * W, d1)
    w1s = np.pad(w1s, ((0, 0), (0, d1p - d1)))
    b1p = np.pad(b1.reshape(1, -1), ((0, 0), (0, d1p - d1)))
    w2p = np.pad(w2, ((0, d1p - d1), (0, d2p - d2)))
    b2p = np.pad(b2.reshape(1, -1), ((0, 0), (0, d2p - d2)))
    flat += [jnp.asarray(w1s, jnp.bfloat16), jnp.asarray(b1p, jnp.float32),
             jnp.asarray(w2p, jnp.bfloat16), jnp.asarray(b2p, jnp.float32)]
    return flat


# ------------------------------ fused kernel ------------------------------- #
def _make_fused_kernel(num_layer, channel, kernal, pad, H, W):
    k = kernal
    f32 = jnp.float32
    bf16 = jnp.bfloat16

    def shifted(a, s):
        """result[y] = a[y - s], rows outside [0, H) are zero; s is a static int.
        Sublane rotation on the XLU + an iota mask -- no VMEM round trip."""
        if s == 0:
            return a
        r = pltpu.roll(a, shift=s % H, axis=0)
        rows = jax.lax.broadcasted_iota(jnp.int32, a.shape, 0)
        if s > 0:
            return jnp.where(rows >= s, r, 0.0)
        return jnp.where(rows < H + s, r, 0.0)

    def kernel(x_ref, *refs):
        out_ref = refs[-1]
        wrefs = refs[:-1]

        act = x_ref[0]                                  # (H, C0*W), lane order c*W + x
        idx = 0
        for layer in range(num_layer):
            bq_ref, bias_ref = wrefs[idx], wrefs[idx + 1]
            idx += 2

            # Conv2d (+ x-direction of AvgPool) as ONE MXU matmul: the k row taps of
            # the zero-row-padded activation are concatenated along the lane axis
            # (K = k*Cin*W) against the K-stacked folded Toeplitz matrix.
            lhs = jnp.concatenate([shifted(act, pad - ky) for ky in range(k)], axis=1)
            q = jnp.dot(lhs.astype(bf16), bq_ref[...],
                        preferred_element_type=f32) + bias_ref[...]

            # y-direction of AvgPool2d (count_include_pad=True): k shifted-row adds on
            # the VPU; the zero rows reproduce the pool's row padding exactly.
            act = q
            for py in range(k):
                if py != pad:
                    act = act + shifted(q, pad - py)

        # Linear -> Linear head.  The NCHW flatten permutation is pre-folded into w1;
        # flatten (H, C*W) -> (1, H*C*W) in-register by lane-concatenating the rows,
        # then a single K = H*C*W matmul (no per-row M=1 matmul chain).
        w1_ref, b1_ref, w2_ref, b2_ref = wrefs[idx:idx + 4]
        act_flat = jnp.concatenate([act[y:y + 1, :] for y in range(H)], axis=1)
        hidden = jnp.dot(act_flat.astype(bf16), w1_ref[...],
                         preferred_element_type=f32) + b1_ref[...]
        logits = jnp.dot(hidden.astype(bf16), w2_ref[...],
                         preferred_element_type=f32) + b2_ref[...]
        out_ref[0] = logits                             # lane-dense (1, 128) store

    return kernel


def cnnn_forward(x_nchw, kernel_weights, *, num_layer, channel, kernal, pad, dim_out):
    N, c0, H, W = x_nchw.shape
    assert c0 == channel[0]
    d2p = kernel_weights[-1].shape[-1]                  # padded logits width (>= dim_out)
    kernel = _make_fused_kernel(num_layer, channel, kernal, pad, H, W)

    # Present the input lane-dense: (N, H, C*W) with lane order c*W + x.  Pure layout
    # plumbing done once in XLA, so the kernel's first matmul already sees K = k*C0*W.
    x_hcw = jnp.transpose(x_nchw.astype(jnp.float32), (0, 2, 1, 3)).reshape(N, H, c0 * W)

    def const_spec(shape):
        nd = len(shape)
        return pl.BlockSpec(shape, lambda n, _nd=nd: (0,) * _nd)

    in_specs = [pl.BlockSpec((1, H, c0 * W), lambda n: (n, 0, 0))]
    in_specs += [const_spec(wgt.shape) for wgt in kernel_weights]
    out_spec = pl.BlockSpec((1, 1, d2p), lambda n: (n, 0, 0))

    out = pl.pallas_call(
        kernel,
        out_shape=jax.ShapeDtypeStruct((N, 1, d2p), jnp.float32),
        grid_spec=pltpu.PrefetchScalarGridSpec(
            num_scalar_prefetch=0,
            grid=(N,),
            in_specs=in_specs,
            out_specs=out_spec,
        ),
        compiler_params=pltpu.CompilerParams(
            dimension_semantics=("parallel",),          # v7x: both TensorCores get a sample
        ),
    )(x_hcw, *kernel_weights)
    return out.reshape(N, d2p)[:, :dim_out]


# ------------------------------ Parameter init ----------------------------- #
def init_params(key, num_layer, channel, kernal, dim_in, dim_out, dim_out1):
    params = {"convs": []}
    for i in range(num_layer):
        cin, cout = channel[i], channel[i + 1]
        key, kw, kb = jax.random.split(key, 3)
        fan_in = cin * kernal * kernal
        fan_out = cout * kernal * kernal
        bound = math.sqrt(6.0 / (fan_in + fan_out))             # xavier_uniform
        w = jax.random.uniform(kw, (kernal, kernal, cin, cout), jnp.float32,
                               -bound, bound)
        bbound = 1.0 / math.sqrt(fan_in)                        # torch conv bias default
        b = jax.random.uniform(kb, (1, cout), jnp.float32, -bbound, bbound)
        params["convs"].append((w, b))

    feat = channel[num_layer] * dim_in * dim_in
    key, k1, k1b, k2, k2b = jax.random.split(key, 5)
    std1 = math.sqrt(2.0 / (feat + dim_out1))                   # xavier_normal
    w1 = jax.random.normal(k1, (feat, dim_out1), jnp.float32) * std1
    b1b = 1.0 / math.sqrt(feat)
    b1 = jax.random.uniform(k1b, (1, dim_out1), jnp.float32, -b1b, b1b)
    std2 = math.sqrt(2.0 / (dim_out1 + dim_out))
    w2 = jax.random.normal(k2, (dim_out1, dim_out), jnp.float32) * std2
    b2b = 1.0 / math.sqrt(dim_out1)
    b2 = jax.random.uniform(k2b, (1, dim_out), jnp.float32, -b2b, b2b)
    params["mlp"] = (w1, b1, w2, b2)
    return params


# ------------------------------ Pure-JAX reference -------------------------- #
def cnnn_reference(x_nchw, params, *, kernal, pad):
    h = x_nchw.astype(jnp.float32)
    for (w, b) in params["convs"]:
        w_oihw = jnp.transpose(w, (3, 2, 0, 1))
        h = jax.lax.conv_general_dilated(
            h, w_oihw, (1, 1), [(pad, pad), (pad, pad)],
            dimension_numbers=("NCHW", "OIHW", "NCHW"))
        h = h + b.reshape(1, -1, 1, 1)
        hp = jnp.pad(h, ((0, 0), (0, 0), (pad, pad), (pad, pad)))
        h = jax.lax.reduce_window(hp, 0.0, jax.lax.add,
                                  (1, 1, kernal, kernal),
                                  (1, 1, 1, 1), "VALID") / float(kernal * kernal)
    flat = h.reshape(h.shape[0], -1)
    w1, b1, w2, b2 = params["mlp"]
    return (flat @ w1 + b1) @ w2 + b2


if __name__ == "__main__":
    # Small config consistent with the module:
    # num_layer=2, channel=[4, 8, 8], kernel=3, pad=1 (spatial size preserved),
    # dim_in=16 (spatial), dim_out1=32 (hidden), dim_out=10 (classes), batch=2.
    num_layer = 2
    channel = [4, 8, 8]
    kernal = 3
    pad = 1
    dim_in = 16
    dim_out1 = 32
    dim_out = 10
    batch = 2

    key = jax.random.PRNGKey(0)
    key, kx = jax.random.split(key)
    x = jax.random.normal(kx, (batch, channel[0], dim_in, dim_in), jnp.float32)

    params = init_params(key, num_layer, channel, kernal, dim_in, dim_out, dim_out1)
    kparams = prepare_kernel_params(params, num_layer=num_layer, channel=channel,
                                    kernal=kernal, pad=pad, dim_in=dim_in)

    out = cnnn_forward(x, kparams, num_layer=num_layer, channel=channel,
                       kernal=kernal, pad=pad, dim_out=dim_out)
    out = jax.block_until_ready(out)

    # sanity check against a pure-JAX reference
    ref = jax.block_until_ready(cnnn_reference(x, params, kernal=kernal, pad=pad))
    assert out.shape == (batch, dim_out)
    assert bool(jnp.all(jnp.isfinite(out)))
    assert bool(jnp.allclose(out, ref, atol=5e-2, rtol=5e-2))

    print("KERNEL_OK")
</pallas_src>

<mosaic_0001>
module attributes {stable_mosaic.version = 11 : i64} {
  func.func @kernel(%arg0: i32, %arg1: memref<1x16x64xf32, #tpu.memory_space<vmem>>, %arg2: memref<192x128xbf16, #tpu.memory_space<vmem>>, %arg3: memref<1x128xf32, #tpu.memory_space<vmem>>, %arg4: memref<384x128xbf16, #tpu.memory_space<vmem>>, %arg5: memref<1x128xf32, #tpu.memory_space<vmem>>, %arg6: memref<2048x128xbf16, #tpu.memory_space<vmem>>, %arg7: memref<1x128xf32, #tpu.memory_space<vmem>>, %arg8: memref<128x128xbf16, #tpu.memory_space<vmem>>, %arg9: memref<1x128xf32, #tpu.memory_space<vmem>>, %arg10: memref<1x1x128xf32, #tpu.memory_space<vmem>>) attributes {dimension_semantics = [#tpu.dimension_semantics<parallel>], iteration_bounds = array<i64: 2>, scalar_prefetch = 0 : i64, scratch_operands = 0 : i64, tpu.core_type = #tpu.core_type<tc>, window_params = [{transform_indices = @transform_0, window_bounds = array<i64: 1, 16, 64>}, {pipeline_mode = #tpu.pipeline_mode<synchronous>, transform_indices = @transform_1, window_bounds = array<i64: 192, 128>}, {pipeline_mode = #tpu.pipeline_mode<synchronous>, transform_indices = @transform_2, window_bounds = array<i64: 1, 128>}, {pipeline_mode = #tpu.pipeline_mode<synchronous>, transform_indices = @transform_3, window_bounds = array<i64: 384, 128>}, {pipeline_mode = #tpu.pipeline_mode<synchronous>, transform_indices = @transform_4, window_bounds = array<i64: 1, 128>}, {pipeline_mode = #tpu.pipeline_mode<synchronous>, transform_indices = @transform_5, window_bounds = array<i64: 2048, 128>}, {pipeline_mode = #tpu.pipeline_mode<synchronous>, transform_indices = @transform_6, window_bounds = array<i64: 1, 128>}, {pipeline_mode = #tpu.pipeline_mode<synchronous>, transform_indices = @transform_7, window_bounds = array<i64: 128, 128>}, {pipeline_mode = #tpu.pipeline_mode<synchronous>, transform_indices = @transform_8, window_bounds = array<i64: 1, 128>}, {transform_indices = @transform_9, window_bounds = array<i64: 1, 1, 128>}]} {
    %c0 = arith.constant 0 : index
    %c0_0 = arith.constant 0 : index
    %c0_1 = arith.constant 0 : index
    %0 = vector.load %arg1[%c0, %c0_0, %c0_1] : memref<1x16x64xf32, #tpu.memory_space<vmem>>, vector<1x16x64xf32>
    %1 = vector.shape_cast %0 : vector<1x16x64xf32> to vector<16x64xf32>
    %c1_i32 = arith.constant 1 : i32
    %2 = tpu.dynamic_rotate %1 by %c1_i32 dim 0 : vector<16x64xf32>, i32 -> vector<16x64xf32>
    %3 = tpu.iota {dimensions = array<i32: 0>} : vector<16x64xi32>
    %c1_i32_2 = arith.constant 1 : i32
    %4 = vector.broadcast %c1_i32_2 : i32 to vector<16x64xi32>
    %5 = arith.cmpi sge, %3, %4 : vector<16x64xi32>
    %cst = arith.constant 0.000000e+00 : f32
    %6 = vector.broadcast %cst : f32 to vector<16x64xf32>
    %7 = arith.select %5, %2, %6 : vector<16x64xi1>, vector<16x64xf32>
    %c15_i32 = arith.constant 15 : i32
    %8 = tpu.dynamic_rotate %1 by %c15_i32 dim 0 : vector<16x64xf32>, i32 -> vector<16x64xf32>
    %9 = tpu.iota {dimensions = array<i32: 0>} : vector<16x64xi32>
    %c15_i32_3 = arith.constant 15 : i32
    %10 = vector.broadcast %c15_i32_3 : i32 to vector<16x64xi32>
    %11 = arith.cmpi slt, %9, %10 : vector<16x64xi32>
    %cst_4 = arith.constant 0.000000e+00 : f32
    %12 = vector.broadcast %cst_4 : f32 to vector<16x64xf32>
    %13 = arith.select %11, %8, %12 : vector<16x64xi1>, vector<16x64xf32>
    %14 = tpu.concatenate %7, %1, %13 in 1 : vector<16x64xf32>, vector<16x64xf32>, vector<16x64xf32> -> vector<16x192xf32>
    %15 = arith.truncf %14 : vector<16x192xf32> to vector<16x192xbf16>
    %c0_5 = arith.constant 0 : index
    %c0_6 = arith.constant 0 : index
    %16 = vector.load %arg2[%c0_5, %c0_6] : memref<192x128xbf16, #tpu.memory_space<vmem>>, vector<192x128xbf16>
    %cst_7 = arith.constant dense<0.000000e+00> : vector<16x128xf32>
    %17 = tpu.matmul %15, %16, %cst_7 {dimension_numbers = #tpu.dot_dimension_numbers<[1], [0], [0], [1], [0, 0, 1, 1], [], []>} : vector<16x192xbf16>, vector<192x128xbf16>, vector<16x128xf32> -> vector<16x128xf32>
    %c0_8 = arith.constant 0 : index
    %c0_9 = arith.constant 0 : index
    %18 = vector.load %arg3[%c0_8, %c0_9] : memref<1x128xf32, #tpu.memory_space<vmem>>, vector<1x128xf32>
    %19 = vector.broadcast %18 : vector<1x128xf32> to vector<16x128xf32>
    %20 = arith.addf %17, %19 : vector<16x128xf32>
    %c1_i32_10 = arith.constant 1 : i32
    %21 = tpu.dynamic_rotate %20 by %c1_i32_10 dim 0 : vector<16x128xf32>, i32 -> vector<16x128xf32>
    %22 = tpu.iota {dimensions = array<i32: 0>} : vector<16x128xi32>
    %c1_i32_11 = arith.constant 1 : i32
    %23 = vector.broadcast %c1_i32_11 : i32 to vector<16x128xi32>
    %24 = arith.cmpi sge, %22, %23 : vector<16x128xi32>
    %cst_12 = arith.constant 0.000000e+00 : f32
    %25 = vector.broadcast %cst_12 : f32 to vector<16x128xf32>
    %26 = arith.select %24, %21, %25 : vector<16x128xi1>, vector<16x128xf32>
    %27 = arith.addf %20, %26 : vector<16x128xf32>
    %c15_i32_13 = arith.constant 15 : i32
    %28 = tpu.dynamic_rotate %20 by %c15_i32_13 dim 0 : vector<16x128xf32>, i32 -> vector<16x128xf32>
    %29 = tpu.iota {dimensions = array<i32: 0>} : vector<16x128xi32>
    %c15_i32_14 = arith.constant 15 : i32
    %30 = vector.broadcast %c15_i32_14 : i32 to vector<16x128xi32>
    %31 = arith.cmpi slt, %29, %30 : vector<16x128xi32>
    %cst_15 = arith.constant 0.000000e+00 : f32
    %32 = vector.broadcast %cst_15 : f32 to vector<16x128xf32>
    %33 = arith.select %31, %28, %32 : vector<16x128xi1>, vector<16x128xf32>
    %34 = arith.addf %27, %33 : vector<16x128xf32>
    %c1_i32_16 = arith.constant 1 : i32
    %35 = tpu.dynamic_rotate %34 by %c1_i32_16 dim 0 : vector<16x128xf32>, i32 -> vector<16x128xf32>
    %36 = tpu.iota {dimensions = array<i32: 0>} : vector<16x128xi32>
    %c1_i32_17 = arith.constant 1 : i32
    %37 = vector.broadcast %c1_i32_17 : i32 to vector<16x128xi32>
    %38 = arith.cmpi sge, %36, %37 : vector<16x128xi32>
    %cst_18 = arith.constant 0.000000e+00 : f32
    %39 = vector.broadcast %cst_18 : f32 to vector<16x128xf32>
    %40 = arith.select %38, %35, %39 : vector<16x128xi1>, vector<16x128xf32>
    %c15_i32_19 = arith.constant 15 : i32
    %41 = tpu.dynamic_rotate %34 by %c15_i32_19 dim 0 : vector<16x128xf32>, i32 -> vector<16x128xf32>
    %42 = tpu.iota {dimensions = array<i32: 0>} : vector<16x128xi32>
    %c15_i32_20 = arith.constant 15 : i32
    %43 = vector.broadcast %c15_i32_20 : i32 to vector<16x128xi32>
    %44 = arith.cmpi slt, %42, %43 : vector<16x128xi32>
    %cst_21 = arith.constant 0.000000e+00 : f32
    %45 = vector.broadcast %cst_21 : f32 to vector<16x128xf32>
    %46 = arith.select %44, %41, %45 : vector<16x128xi1>, vector<16x128xf32>
    %47 = tpu.concatenate %40, %34, %46 in 1 : vector<16x128xf32>, vector<16x128xf32>, vector<16x128xf32> -> vector<16x384xf32>
    %48 = arith.truncf %47 : vector<16x384xf32> to vector<16x384xbf16>
    %c0_22 = arith.constant 0 : index
    %c0_23 = arith.constant 0 : index
    %49 = vector.load %arg4[%c0_22, %c0_23] : memref<384x128xbf16, #tpu.memory_space<vmem>>, vector<384x128xbf16>
    %cst_24 = arith.constant dense<0.000000e+00> : vector<16x128xf32>
    %50 = tpu.matmul %48, %49, %cst_24 {dimension_numbers = #tpu.dot_dimension_numbers<[1], [0], [0], [1], [0, 0, 1, 1], [], []>} : vector<16x384xbf16>, vector<384x128xbf16>, vector<16x128xf32> -> vector<16x128xf32>
    %c0_25 = arith.constant 0 : index
    %c0_26 = arith.constant 0 : index
    %51 = vector.load %arg5[%c0_25, %c0_26] : memref<1x128xf32, #tpu.memory_space<vmem>>, vector<1x128xf32>
    %52 = vector.broadcast %51 : vector<1x128xf32> to vector<16x128xf32>
    %53 = arith.addf %50, %52 : vector<16x128xf32>
    %c1_i32_27 = arith.constant 1 : i32
    %54 = tpu.dynamic_rotate %53 by %c1_i32_27 dim 0 : vector<16x128xf32>, i32 -> vector<16x128xf32>
    %55 = tpu.iota {dimensions = array<i32: 0>} : vector<16x128xi32>
    %c1_i32_28 = arith.constant 1 : i32
    %56 = vector.broadcast %c1_i32_28 : i32 to vector<16x128xi32>
    %57 = arith.cmpi sge, %55, %56 : vector<16x128xi32>
    %cst_29 = arith.constant 0.000000e+00 : f32
    %58 = vector.broadcast %cst_29 : f32 to vector<16x128xf32>
    %59 = arith.select %57, %54, %58 : vector<16x128xi1>, vector<16x128xf32>
    %60 = arith.addf %53, %59 : vector<16x128xf32>
    %c15_i32_30 = arith.constant 15 : i32
    %61 = tpu.dynamic_rotate %53 by %c15_i32_30 dim 0 : vector<16x128xf32>, i32 -> vector<16x128xf32>
    %62 = tpu.iota {dimensions = array<i32: 0>} : vector<16x128xi32>
    %c15_i32_31 = arith.constant 15 : i32
    %63 = vector.broadcast %c15_i32_31 : i32 to vector<16x128xi32>
    %64 = arith.cmpi slt, %62, %63 : vector<16x128xi32>
    %cst_32 = arith.constant 0.000000e+00 : f32
    %65 = vector.broadcast %cst_32 : f32 to vector<16x128xf32>
    %66 = arith.select %64, %61, %65 : vector<16x128xi1>, vector<16x128xf32>
    %67 = arith.addf %60, %66 : vector<16x128xf32>
    %68 = vector.extract_strided_slice %67 {offsets = [0, 0], sizes = [1, 128], strides = [1, 1]} : vector<16x128xf32> to vector<1x128xf32>
    %69 = vector.extract_strided_slice %67 {offsets = [1, 0], sizes = [1, 128], strides = [1, 1]} : vector<16x128xf32> to vector<1x128xf32>
    %70 = vector.extract_strided_slice %67 {offsets = [2, 0], sizes = [1, 128], strides = [1, 1]} : vector<16x128xf32> to vector<1x128xf32>
    %71 = vector.extract_strided_slice %67 {offsets = [3, 0], sizes = [1, 128], strides = [1, 1]} : vector<16x128xf32> to vector<1x128xf32>
    %72 = vector.extract_strided_slice %67 {offsets = [4, 0], sizes = [1, 128], strides = [1, 1]} : vector<16x128xf32> to vector<1x128xf32>
    %73 = vector.extract_strided_slice %67 {offsets = [5, 0], sizes = [1, 128], strides = [1, 1]} : vector<16x128xf32> to vector<1x128xf32>
    %74 = vector.extract_strided_slice %67 {offsets = [6, 0], sizes = [1, 128], strides = [1, 1]} : vector<16x128xf32> to vector<1x128xf32>
    %75 = vector.extract_strided_slice %67 {offsets = [7, 0], sizes = [1, 128], strides = [1, 1]} : vector<16x128xf32> to vector<1x128xf32>
    %76 = vector.extract_strided_slice %67 {offsets = [8, 0], sizes = [1, 128], strides = [1, 1]} : vector<16x128xf32> to vector<1x128xf32>
    %77 = vector.extract_strided_slice %67 {offsets = [9, 0], sizes = [1, 128], strides = [1, 1]} : vector<16x128xf32> to vector<1x128xf32>
    %78 = vector.extract_strided_slice %67 {offsets = [10, 0], sizes = [1, 128], strides = [1, 1]} : vector<16x128xf32> to vector<1x128xf32>
    %79 = vector.extract_strided_slice %67 {offsets = [11, 0], sizes = [1, 128], strides = [1, 1]} : vector<16x128xf32> to vector<1x128xf32>
    %80 = vector.extract_strided_slice %67 {offsets = [12, 0], sizes = [1, 128], strides = [1, 1]} : vector<16x128xf32> to vector<1x128xf32>
    %81 = vector.extract_strided_slice %67 {offsets = [13, 0], sizes = [1, 128], strides = [1, 1]} : vector<16x128xf32> to vector<1x128xf32>
    %82 = vector.extract_strided_slice %67 {offsets = [14, 0], sizes = [1, 128], strides = [1, 1]} : vector<16x128xf32> to vector<1x128xf32>
    %83 = vector.extract_strided_slice %67 {offsets = [15, 0], sizes = [1, 128], strides = [1, 1]} : vector<16x128xf32> to vector<1x128xf32>
    %84 = tpu.concatenate %68, %69, %70, %71, %72, %73, %74, %75, %76, %77, %78, %79, %80, %81, %82, %83 in 1 : vector<1x128xf32>, vector<1x128xf32>, vector<1x128xf32>, vector<1x128xf32>, vector<1x128xf32>, vector<1x128xf32>, vector<1x128xf32>, vector<1x128xf32>, vector<1x128xf32>, vector<1x128xf32>, vector<1x128xf32>, vector<1x128xf32>, vector<1x128xf32>, vector<1x128xf32>, vector<1x128xf32>, vector<1x128xf32> -> vector<1x2048xf32>
    %85 = arith.truncf %84 : vector<1x2048xf32> to vector<1x2048xbf16>
    %c0_33 = arith.constant 0 : index
    %c0_34 = arith.constant 0 : index
    %86 = vector.load %arg6[%c0_33, %c0_34] : memref<2048x128xbf16, #tpu.memory_space<vmem>>, vector<2048x128xbf16>
    %cst_35 = arith.constant dense<0.000000e+00> : vector<1x128xf32>
    %87 = tpu.matmul %85, %86, %cst_35 {dimension_numbers = #tpu.dot_dimension_numbers<[1], [0], [0], [1], [0, 0, 1, 1], [], []>} : vector<1x2048xbf16>, vector<2048x128xbf16>, vector<1x128xf32> -> vector<1x128xf32>
    %c0_36 = arith.constant 0 : index
    %c0_37 = arith.constant 0 : index
    %88 = vector.load %arg7[%c0_36, %c0_37] : memref<1x128xf32, #tpu.memory_space<vmem>>, vector<1x128xf32>
    %89 = arith.addf %87, %88 : vector<1x128xf32>
    %90 = arith.truncf %89 : vector<1x128xf32> to vector<1x128xbf16>
    %c0_38 = arith.constant 0 : index
    %c0_39 = arith.constant 0 : index
    %91 = vector.load %arg8[%c0_38, %c0_39] : memref<128x128xbf16, #tpu.memory_space<vmem>>, vector<128x128xbf16>
    %cst_40 = arith.constant dense<0.000000e+00> : vector<1x128xf32>
    %92 = tpu.matmul %90, %91, %cst_40 {dimension_numbers = #tpu.dot_dimension_numbers<[1], [0], [0], [1], [0, 0, 1, 1], [], []>} : vector<1x128xbf16>, vector<128x128xbf16>, vector<1x128xf32> -> vector<1x128xf32>
    %c0_41 = arith.constant 0 : index
    %c0_42 = arith.constant 0 : index
    %93 = vector.load %arg9[%c0_41, %c0_42] : memref<1x128xf32, #tpu.memory_space<vmem>>, vector<1x128xf32>
    %94 = arith.addf %92, %93 : vector<1x128xf32>
    %c0_43 = arith.constant 0 : index
    %c0_44 = arith.constant 0 : index
    %c0_45 = arith.constant 0 : index
    %95 = vector.load %arg10[%c0_43, %c0_44, %c0_45] : memref<1x1x128xf32, #tpu.memory_space<vmem>>, vector<1x1x128xf32>
    %96 = vector.shape_cast %95 : vector<1x1x128xf32> to vector<1x128xf32>
    %97 = vector.shape_cast %94 : vector<1x128xf32> to vector<1x1x128xf32>
    tpu.vector_store %arg10[%c0_43, %c0_44, %c0_45], %97 {strides = array<i32>} : memref<1x1x128xf32, #tpu.memory_space<vmem>>, vector<1x1x128xf32>,
    return
  }
  func.func @transform_0(%arg0: i32) -> (i32, i32, i32) {
    %c0_i32 = arith.constant 0 : i32
    %c0_i32_0 = arith.constant 0 : i32
    %c0_i32_1 = arith.constant 0 : i32
    return %arg0, %c0_i32, %c0_i32_0 : i32, i32, i32
  }
  func.func @transform_1(%arg0: i32) -> (i32, i32) {
    %c0_i32 = arith.constant 0 : i32
    %c0_i32_0 = arith.constant 0 : i32
    %c0_i32_1 = arith.constant 0 : i32
    return %c0_i32, %c0_i32_0 : i32, i32
  }
  func.func @transform_2(%arg0: i32) -> (i32, i32) {
    %c0_i32 = arith.constant 0 : i32
    %c0_i32_0 = arith.constant 0 : i32
    %c0_i32_1 = arith.constant 0 : i32
    return %c0_i32, %c0_i32_0 : i32, i32
  }
  func.func @transform_3(%arg0: i32) -> (i32, i32) {
    %c0_i32 = arith.constant 0 : i32
    %c0_i32_0 = arith.constant 0 : i32
    %c0_i32_1 = arith.constant 0 : i32
    return %c0_i32, %c0_i32_0 : i32, i32
  }
  func.func @transform_4(%arg0: i32) -> (i32, i32) {
    %c0_i32 = arith.constant 0 : i32
    %c0_i32_0 = arith.constant 0 : i32
    %c0_i32_1 = arith.constant 0 : i32
    return %c0_i32, %c0_i32_0 : i32, i32
  }
  func.func @transform_5(%arg0: i32) -> (i32, i32) {
    %c0_i32 = arith.constant 0 : i32
    %c0_i32_0 = arith.constant 0 : i32
    %c0_i32_1 = arith.constant 0 : i32
    return %c0_i32, %c0_i32_0 : i32, i32
  }
  func.func @transform_6(%arg0: i32) -> (i32, i32) {
    %c0_i32 = arith.constant 0 : i32
    %c0_i32_0 = arith.constant 0 : i32
    %c0_i32_1 = arith.constant 0 : i32
    return %c0_i32, %c0_i32_0 : i32, i32
  }
  func.func @transform_7(%arg0: i32) -> (i32, i32) {
    %c0_i32 = arith.constant 0 : i32
    %c0_i32_0 = arith.constant 0 : i32
    %c0_i32_1 = arith.constant 0 : i32
    return %c0_i32, %c0_i32_0 : i32, i32
  }
  func.func @transform_8(%arg0: i32) -> (i32, i32) {
    %c0_i32 = arith.constant 0 : i32
    %c0_i32_0 = arith.constant 0 : i32
    %c0_i32_1 = arith.constant 0 : i32
    return %c0_i32, %c0_i32_0 : i32, i32
  }
  func.func @transform_9(%arg0: i32) -> (i32, i32, i32) {
    %c0_i32 = arith.constant 0 : i32
    %c0_i32_0 = arith.constant 0 : i32
    %c0_i32_1 = arith.constant 0 : i32
    return %arg0, %c0_i32, %c0_i32_0 : i32, i32, i32
  }
}

</mosaic_0001>

<llo_original>
// kernel: tpu_custom_call.1
$region0: #{tpu_custom_call.1}
  #allocation0 [shape = 'u32[]', space=smem, size = 0x4, offset = 0x4, fixed_abs, tag = 'smem constant byte address 0x4 - core index']
  #allocation1 [shape = 'u32[144,128]{1,0:T(1,128)}', space=vmem, size = 0x12000, scoped, tag = 'internal scratch']
  %s0 = inlined_call_operand.hbm [shape: f32[2,16,64], index: 0, kind: input, shape index: {}]
  %s1 = inlined_call_operand.hbm [shape: bf16[192,128], index: 1, kind: input, shape index: {}]
  %s2 = inlined_call_operand.vmem [shape: f32[1,128], index: 2, kind: input, shape index: {}]
  %s3 = inlined_call_operand.hbm [shape: bf16[384,128], index: 3, kind: input, shape index: {}]
  %s4 = inlined_call_operand.vmem [shape: f32[1,128], index: 4, kind: input, shape index: {}]
  %s5 = inlined_call_operand.hbm [shape: bf16[2048,128], index: 5, kind: input, shape index: {}]
  %s6 = inlined_call_operand.vmem [shape: f32[1,128], index: 6, kind: input, shape index: {}]
  %s7 = inlined_call_operand.hbm [shape: bf16[128,128], index: 7, kind: input, shape index: {}]
  %s8 = inlined_call_operand.vmem [shape: f32[1,128], index: 8, kind: input, shape index: {}]
  %s9 = inlined_call_operand.hbm [shape: f32[2,1,128], index: 9, kind: output, shape index: {}]
  %s10 = sld [smem:[#allocation0]]
  $region89: #{tpu_custom_call.1} parent=0
    _
  %s12 = ssub.s32 1, %s10
  %s13 = scalar_select 0, %s12, %s10
  $region1: #{tpu_custom_call.1} parent=0
    #allocation2 [shape = 'u8[16384]{0}', space=vmem, size = 0x4000, scoped, tag = 'input window, operand 0']
    #allocation3 [shape = 's32[2]{0}', space=sflag, size = 0x8, scoped, tag = 'scoped memory for tpu_custom_call.1']
    #allocation4 [shape = 's32[2]{0}', space=sflag, size = 0x8, scoped, tag = 'scoped memory for tpu_custom_call.1']
    #allocation5 [shape = 'u8[49152]{0}', space=vmem, size = 0xc000, scoped, tag = 'input window, operand 1, single buffered']
    #allocation6 [shape = 's32[1]{0}', space=sflag, size = 0x4, scoped, tag = 'scoped memory for tpu_custom_call.1']
    #allocation7 [shape = 'u8[98304]{0}', space=vmem, size = 0x18000, scoped, tag = 'input window, operand 3, single buffered']
    #allocation8 [shape = 'u8[524288]{0}', space=vmem, size = 0x80000, scoped, tag = 'input window, operand 5, single buffered']
    #allocation9 [shape = 's32[1]{0}', space=sflag, size = 0x4, scoped, tag = 'scoped memory for tpu_custom_call.1']
    #allocation10 [shape = 'u8[32768]{0}', space=vmem, size = 0x8000, scoped, tag = 'input window, operand 7, single buffered']
    #allocation11 [shape = 'u8[1024]{0}', space=vmem, size = 0x400, scoped, tag = 'output window, operand 0']
    %14 = vsyncpa [#allocation3], 0
    %s15 = scalar_lea.sflag [#allocation3], 1
    %16 = vsyncpa %s15, 0
    %17 = vsyncpa [#allocation6], 0
    %18 = vsyncpa [#allocation9], 0
    %19 = vsyncpa [#allocation4], 0
    %s20 = scalar_lea.sflag [#allocation4], 1
    %21 = vsyncpa %s20, 0
    loop: start=0, step=1, limit=4
    $region2: #{tpu_custom_call.1} parent=1 // loop_pre_header
      _
    $region3: #{tpu_custom_call.1} parent=1 // loop_header
      %s23 = sphi 0, %s27
      %p24 = scmp.ge.s32.totalorder %s23, 4
      %s33 = sphi 0, %s35
      %s36 = sphi 0, %s33
      %s37 = sphi 0, %s36
      %s53 = sphi 0, %s37
      %s57 = sphi 0, %s57
      %s59 = sphi 0, %s57
      %s60 = sphi 0, %s59
      %s74 = sphi 0, %s60
      %s78 = sphi 0, %s78
      %s80 = sphi 0, %s78
      %s81 = sphi 0, %s80
      %s95 = sphi 0, %s81
      %s99 = sphi 0, %s99
      %s101 = sphi 0, %s99
      %s102 = sphi 0, %s101
      %s116 = sphi 0, %s102
      %s120 = sphi 0, %s120
      %s122 = sphi 0, %s120
      %s123 = sphi 0, %s122
      %s137 = sphi 0, %s123
      %s141 = sphi 0, %s141
      %s143 = sphi 0, %s141
      %s144 = sphi 0, %s143
      %s158 = sphi 0, %s144
      %s162 = sphi 0, %s162
      %s164 = sphi 0, %s162
      %s165 = sphi 0, %s164
      %s179 = sphi 0, %s165
      %s183 = sphi 0, %s183
      %s185 = sphi 0, %s183
      %s186 = sphi 0, %s185
      %s200 = sphi 0, %s186
      %s204 = sphi 0, %s204
      %s206 = sphi 0, %s204
      %s207 = sphi 0, %s206
      %s221 = sphi 0, %s207
      %s227 = sphi 0, %s229
      %s230 = sphi 0, %s227
      %s231 = sphi 0, %s230
      %s247 = sphi 0, %s231
    $region4: #{tpu_custom_call.1} parent=1 // loop_header_branch
      %26 = sbr.rel (%p24) target = $region8
    $region5: #{tpu_custom_call.1} parent=1 // loop_body
      %s28 = ssub.s32 %s23, 1
      %s29 = ssub.s32 %s23, 2
      %s30 = sadd.s32 %s23, 1
      %s31 = ssub.s32 %s23, %s30
      %p32 = scmp.eq.s32.totalorder %s31, 0
      %s34 = sadd.s32 %s33, 1
      %s35 = scalar_select %p32, %s33, %s34
      %p38 = pneg %p32
      %p39 = scmp.eq.s32.totalorder %s23, 1
      %p40 = por %p38, %p39
      %p41 = scmp.ne.s32.totalorder %s33, %s36
      %p42 = scmp.eq.s32.totalorder %s23, 0
      %p43 = por %p41, %p42
      %p44 = scmp.ne.s32.totalorder %s33, %s36
      %p45 = scmp.eq.s32.totalorder %s28, 1
      %p46 = por %p44, %p45
      %p47 = scmp.ne.s32.totalorder %s36, %s37
      %p48 = scmp.eq.s32.totalorder %s28, 0
      %p49 = por %p47, %p48
      %p50 = scmp.ne.s32.totalorder %s36, %s37
      %p51 = scmp.eq.s32.totalorder %s29, 1
      %p52 = por %p50, %p51
      %p54 = scmp.ne.s32.totalorder %s37, %s53
      %p55 = scmp.eq.s32.totalorder %s29, 0
      %p56 = por %p54, %p55
      %s58 = sadd.s32 %s57, 1
      %p61 = scmp.eq.s32.totalorder %s23, 1
      %p62 = scmp.ne.s32.totalorder %s57, %s59
      %p63 = scmp.eq.s32.totalorder %s23, 0
      %p64 = por %p62, %p63
      %p65 = scmp.ne.s32.totalorder %s57, %s59
      %p66 = scmp.eq.s32.totalorder %s28, 1
      %p67 = por %p65, %p66
      %p68 = scmp.ne.s32.totalorder %s59, %s60
      %p69 = scmp.eq.s32.totalorder %s28, 0
      %p70 = por %p68, %p69
      %p71 = scmp.ne.s32.totalorder %s59, %s60
      %p72 = scmp.eq.s32.totalorder %s29, 1
      %p73 = por %p71, %p72
      %p75 = scmp.ne.s32.totalorder %s60, %s74
      %p76 = scmp.eq.s32.totalorder %s29, 0
      %p77 = por %p75, %p76
      %s79 = sadd.s32 %s78, 1
      %p82 = scmp.eq.s32.totalorder %s23, 1
      %p83 = scmp.ne.s32.totalorder %s78, %s80
      %p84 = scmp.eq.s32.totalorder %s23, 0
      %p85 = por %p83, %p84
      %p86 = scmp.ne.s32.totalorder %s78, %s80
      %p87 = scmp.eq.s32.totalorder %s28, 1
      %p88 = por %p86, %p87
      %p89 = scmp.ne.s32.totalorder %s80, %s81
      %p90 = scmp.eq.s32.totalorder %s28, 0
      %p91 = por %p89, %p90
      %p92 = scmp.ne.s32.totalorder %s80, %s81
      %p93 = scmp.eq.s32.totalorder %s29, 1
      %p94 = por %p92, %p93
      %p96 = scmp.ne.s32.totalorder %s81, %s95
      %p97 = scmp.eq.s32.totalorder %s29, 0
      %p98 = por %p96, %p97
      %s100 = sadd.s32 %s99, 1
      %p103 = scmp.eq.s32.totalorder %s23, 1
      %p104 = scmp.ne.s32.totalorder %s99, %s101
      %p105 = scmp.eq.s32.totalorder %s23, 0
      %p106 = por %p104, %p105
      %p107 = scmp.ne.s32.totalorder %s99, %s101
      %p108 = scmp.eq.s32.totalorder %s28, 1
      %p109 = por %p107, %p108
      %p110 = scmp.ne.s32.totalorder %s101, %s102
      %p111 = scmp.eq.s32.totalorder %s28, 0
      %p112 = por %p110, %p111
      %p113 = scmp.ne.s32.totalorder %s101, %s102
      %p114 = scmp.eq.s32.totalorder %s29, 1
      %p115 = por %p113, %p114
      %p117 = scmp.ne.s32.totalorder %s102, %s116
      %p118 = scmp.eq.s32.totalorder %s29, 0
      %p119 = por %p117, %p118
      %s121 = sadd.s32 %s120, 1
      %p124 = scmp.eq.s32.totalorder %s23, 1
      %p125 = scmp.ne.s32.totalorder %s120, %s122
      %p126 = scmp.eq.s32.totalorder %s23, 0
      %p127 = por %p125, %p126
      %p128 = scmp.ne.s32.totalorder %s120, %s122
      %p129 = scmp.eq.s32.totalorder %s28, 1
      %p130 = por %p128, %p129
      %p131 = scmp.ne.s32.totalorder %s122, %s123
      %p132 = scmp.eq.s32.totalorder %s28, 0
      %p133 = por %p131, %p132
      %p134 = scmp.ne.s32.totalorder %s122, %s123
      %p135 = scmp.eq.s32.totalorder %s29, 1
      %p136 = por %p134, %p135
      %p138 = scmp.ne.s32.totalorder %s123, %s137
      %p139 = scmp.eq.s32.totalorder %s29, 0
      %p140 = por %p138, %p139
      %s142 = sadd.s32 %s141, 1
      %p145 = scmp.eq.s32.totalorder %s23, 1
      %p146 = scmp.ne.s32.totalorder %s141, %s143
      %p147 = scmp.eq.s32.totalorder %s23, 0
      %p148 = por %p146, %p147
      %p149 = scmp.ne.s32.totalorder %s141, %s143
      %p150 = scmp.eq.s32.totalorder %s28, 1
      %p151 = por %p149, %p150
      %p152 = scmp.ne.s32.totalorder %s143, %s144
      %p153 = scmp.eq.s32.totalorder %s28, 0
      %p154 = por %p152, %p153
      %p155 = scmp.ne.s32.totalorder %s143, %s144
      %p156 = scmp.eq.s32.totalorder %s29, 1
      %p157 = por %p155, %p156
      %p159 = scmp.ne.s32.totalorder %s144, %s158
      %p160 = scmp.eq.s32.totalorder %s29, 0
      %p161 = por %p159, %p160
      %s163 = sadd.s32 %s162, 1
      %p166 = scmp.eq.s32.totalorder %s23, 1
      %p167 = scmp.ne.s32.totalorder %s162, %s164
      %p168 = scmp.eq.s32.totalorder %s23, 0
      %p169 = por %p167, %p168
      %p170 = scmp.ne.s32.totalorder %s162, %s164
      %p171 = scmp.eq.s32.totalorder %s28, 1
      %p172 = por %p170, %p171
      %p173 = scmp.ne.s32.totalorder %s164, %s165
      %p174 = scmp.eq.s32.totalorder %s28, 0
      %p175 = por %p173, %p174
      %p176 = scmp.ne.s32.totalorder %s164, %s165
      %p177 = scmp.eq.s32.totalorder %s29, 1
      %p178 = por %p176, %p177
      %p180 = scmp.ne.s32.totalorder %s165, %s179
      %p181 = scmp.eq.s32.totalorder %s29, 0
      %p182 = por %p180, %p181
      %s184 = sadd.s32 %s183, 1
      %p187 = scmp.eq.s32.totalorder %s23, 1
      %p188 = scmp.ne.s32.totalorder %s183, %s185
      %p189 = scmp.eq.s32.totalorder %s23, 0
      %p190 = por %p188, %p189
      %p191 = scmp.ne.s32.totalorder %s183, %s185
      %p192 = scmp.eq.s32.totalorder %s28, 1
      %p193 = por %p191, %p192
      %p194 = scmp.ne.s32.totalorder %s185, %s186
      %p195 = scmp.eq.s32.totalorder %s28, 0
      %p196 = por %p194, %p195
      %p197 = scmp.ne.s32.totalorder %s185, %s186
      %p198 = scmp.eq.s32.totalorder %s29, 1
      %p199 = por %p197, %p198
      %p201 = scmp.ne.s32.totalorder %s186, %s200
      %p202 = scmp.eq.s32.totalorder %s29, 0
      %p203 = por %p201, %p202
      %s205 = sadd.s32 %s204, 1
      %p208 = scmp.eq.s32.totalorder %s23, 1
      %p209 = scmp.ne.s32.totalorder %s204, %s206
      %p210 = scmp.eq.s32.totalorder %s23, 0
      %p211 = por %p209, %p210
      %p212 = scmp.ne.s32.totalorder %s204, %s206
      %p213 = scmp.eq.s32.totalorder %s28, 1
      %p214 = por %p212, %p213
      %p215 = scmp.ne.s32.totalorder %s206, %s207
      %p216 = scmp.eq.s32.totalorder %s28, 0
      %p217 = por %p215, %p216
      %p218 = scmp.ne.s32.totalorder %s206, %s207
      %p219 = scmp.eq.s32.totalorder %s29, 1
      %p220 = por %p218, %p219
      %p222 = scmp.ne.s32.totalorder %s207, %s221
      %p223 = scmp.eq.s32.totalorder %s29, 0
      %p224 = por %p222, %p223
      %s225 = ssub.s32 %s23, %s30
      %p226 = scmp.eq.s32.totalorder %s225, 0
      %s228 = sadd.s32 %s227, 1
      %s229 = scalar_select %p226, %s227, %s228
      %p232 = pneg %p226
      %p233 = scmp.eq.s32.totalorder %s23, 1
      %p234 = por %p232, %p233
      %p235 = scmp.ne.s32.totalorder %s227, %s230
      %p236 = scmp.eq.s32.totalorder %s23, 0
      %p237 = por %p235, %p236
      %p238 = scmp.ne.s32.totalorder %s227, %s230
      %p239 = scmp.eq.s32.totalorder %s28, 1
      %p240 = por %p238, %p239
      %p241 = scmp.ne.s32.totalorder %s230, %s231
      %p242 = scmp.eq.s32.totalorder %s28, 0
      %p243 = por %p241, %p242
      %p244 = scmp.ne.s32.totalorder %s230, %s231
      %p245 = scmp.eq.s32.totalorder %s29, 1
      %p246 = por %p244, %p245
      %p248 = scmp.ne.s32.totalorder %s231, %s247
      %p249 = scmp.eq.s32.totalorder %s29, 0
      %p250 = por %p248, %p249
      %p251 = scmp.le.s32.totalorder 1, %s23
      %p252 = scmp.lt.s32.totalorder %s23, 3
      %p253 = pnand %p251, %p252
      %p254 = pneg %p253
      // Predicated region
      $region9: #{tpu_custom_call.1} parent=5 // pred_check
        _
      $region10: #{tpu_custom_call.1} parent=5 // pred_check_branch
        %256 = sbr.rel (%p253) target = $region12
      $region11: #{tpu_custom_call.1} parent=5 // pred_region
        %s257 = ssub.s32 %s23, 1
        // Predicated region
        $region13: #{tpu_custom_call.1} parent=11 // pred_check
          %p258 = pneg %p70
        $region14: #{tpu_custom_call.1} parent=11 // pred_check_branch
          %260 = sbr.rel (%p258) target = $region16
        $region15: #{tpu_custom_call.1} parent=11 // pred_region
          %s262 = ssub.s32 1536, 1536
          %263 = vsyncadd [#allocation6], %s262
          %s264 = sshll.u32 [#allocation5], 4
          %s265 = int_to_ptr.vmem [resolvable:$true] %s264
          %270 = dma.hbm_to_vmem [thread:$0]  %s1, 1536, %s265, [#allocation6], 64, 64, 4
        $region16: #{tpu_custom_call.1} parent=11 // pred_fallthru
          _
        // Predicated region
        $region17: #{tpu_custom_call.1} parent=11 // pred_check
          %p271 = pneg %p91
        $region18: #{tpu_custom_call.1} parent=11 // pred_check_branch
          %273 = sbr.rel (%p271) target = $region20
        $region19: #{tpu_custom_call.1} parent=11 // pred_region
          _
        $region20: #{tpu_custom_call.1} parent=11 // pred_fallthru
          _
        // Predicated region
        $region21: #{tpu_custom_call.1} parent=11 // pred_check
          %p274 = pneg %p112
        $region22: #{tpu_custom_call.1} parent=11 // pred_check_branch
          %276 = sbr.rel (%p274) target = $region24
        $region23: #{tpu_custom_call.1} parent=11 // pred_region
          %s278 = ssub.s32 3072, 3072
          %279 = vsyncadd [#allocation6], %s278
          %s280 = sshll.u32 [#allocation7], 4
          %s281 = int_to_ptr.vmem [resolvable:$true] %s280
          %286 = dma.hbm_to_vmem [thread:$0]  %s3, 3072, %s281, [#allocation6], 64, 64, 4
        $region24: #{tpu_custom_call.1} parent=11 // pred_fallthru
          _
        // Predicated region
        $region25: #{tpu_custom_call.1} parent=11 // pred_check
          %p287 = pneg %p133
        $region26: #{tpu_custom_call.1} parent=11 // pred_check_branch
          %289 = sbr.rel (%p287) target = $region28
        $region27: #{tpu_custom_call.1} parent=11 // pred_region
          _
        $region28: #{tpu_custom_call.1} parent=11 // pred_fallthru
          _
        // Predicated region
        $region29: #{tpu_custom_call.1} parent=11 // pred_check
          %p290 = pneg %p154
        $region30: #{tpu_custom_call.1} parent=11 // pred_check_branch
          %292 = sbr.rel (%p290) target = $region32
        $region31: #{tpu_custom_call.1} parent=11 // pred_region
          %s294 = ssub.s32 16384, 16384
          %295 = vsyncadd [#allocation9], %s294
          %s296 = sshll.u32 [#allocation8], 4
          %s297 = int_to_ptr.vmem [resolvable:$true] %s296
          %302 = dma.hbm_to_vmem [thread:$0]  %s5, 16384, %s297, [#allocation9], 64, 64, 4
        $region32: #{tpu_custom_call.1} parent=11 // pred_fallthru
          _
        // Predicated region
        $region33: #{tpu_custom_call.1} parent=11 // pred_check
          %p303 = pneg %p175
        $region34: #{tpu_custom_call.1} parent=11 // pred_check_branch
          %305 = sbr.rel (%p303) target = $region36
        $region35: #{tpu_custom_call.1} parent=11 // pred_region
          _
        $region36: #{tpu_custom_call.1} parent=11 // pred_fallthru
          _
        // Predicated region
        $region37: #{tpu_custom_call.1} parent=11 // pred_check
          %p306 = pneg %p196
        $region38: #{tpu_custom_call.1} parent=11 // pred_check_branch
          %308 = sbr.rel (%p306) target = $region40
        $region39: #{tpu_custom_call.1} parent=11 // pred_region
          %s310 = ssub.s32 1024, 1024
          %311 = vsyncadd [#allocation9], %s310
          %s312 = sshll.u32 [#allocation10], 4
          %s313 = int_to_ptr.vmem [resolvable:$true] %s312
          %318 = dma.hbm_to_vmem [thread:$0]  %s7, 1024, %s313, [#allocation9], 64, 64, 4
        $region40: #{tpu_custom_call.1} parent=11 // pred_fallthru
          _
        // Predicated region
        $region41: #{tpu_custom_call.1} parent=11 // pred_check
          %p319 = pneg %p217
        $region42: #{tpu_custom_call.1} parent=11 // pred_check_branch
          %321 = sbr.rel (%p319) target = $region44
        $region43: #{tpu_custom_call.1} parent=11 // pred_region
          _
        $region44: #{tpu_custom_call.1} parent=11 // pred_fallthru
          _
      $region12: #{tpu_custom_call.1} parent=5 // pred_fallthru
        _
      %p322 = scmp.lt.s32.totalorder %s23, 2
      // Predicated region
      $region45: #{tpu_custom_call.1} parent=5 // pred_check
        %p323 = pneg %p322
      $region46: #{tpu_custom_call.1} parent=5 // pred_check_branch
        %325 = sbr.rel (%p323) target = $region48
      $region47: #{tpu_custom_call.1} parent=5 // pred_region
        // Predicated region
        $region49: #{tpu_custom_call.1} parent=47 // pred_check
          %p326 = pneg %p43
        $region50: #{tpu_custom_call.1} parent=47 // pred_check_branch
          %328 = sbr.rel (%p326) target = $region52
        $region51: #{tpu_custom_call.1} parent=47 // pred_region
          %s329 = sand.u32 %s33, 1
          %s330 = scalar_lea.sflag [#allocation3], %s329
          %s331 = sand.u32 %s33, 1
          %s332 = smul.addr %s331, 16
          %s333 = scalar_lea.vmem [#allocation2], %s332
          %s335 = ssub.s32 256, 256
          %336 = vsyncadd %s330, %s335
          %s337 = smul.addr %s23, 2
          %s338 = smul.addr %s337, 128
          %s339 = scalar_lea.hbm %s0, %s338
          %s340 = sshll.u32 %s333, 4
          %s341 = int_to_ptr.vmem [resolvable:$true] %s340
          %346 = dma.hbm_to_vmem [thread:$0]  %s339, 256, %s341, %s330, 128, 128, 8
        $region52: #{tpu_custom_call.1} parent=47 // pred_fallthru
          _
      $region48: #{tpu_custom_call.1} parent=5 // pred_fallthru
        _
      %p347 = scmp.le.s32.totalorder 1, %s23
      %p348 = scmp.lt.s32.totalorder %s23, 3
      %p349 = pnand %p347, %p348
      %p350 = pneg %p349
      // Predicated region
      $region53: #{tpu_custom_call.1} parent=5 // pred_check
        _
      $region54: #{tpu_custom_call.1} parent=5 // pred_check_branch
        %352 = sbr.rel (%p349) target = $region56
      $region55: #{tpu_custom_call.1} parent=5 // pred_region
        %s353 = ssub.s32 %s23, 1
        %s354 = sand.u32 %s36, 1
        %s355 = scalar_lea.sflag [#allocation3], %s354
        %s356 = sand.u32 %s36, 1
        %s357 = smul.addr %s356, 16
        %s358 = scalar_lea.vmem [#allocation2], %s357
        // Predicated region
        $region57: #{tpu_custom_call.1} parent=55 // pred_check
          %p359 = pneg %p49
        $region58: #{tpu_custom_call.1} parent=55 // pred_check_branch
          %361 = sbr.rel (%p359) target = $region60
        $region59: #{tpu_custom_call.1} parent=55 // pred_region
          %362 = dma.done %s355, 256
        $region60: #{tpu_custom_call.1} parent=55 // pred_fallthru
          _
        // Predicated region
        $region61: #{tpu_custom_call.1} parent=55 // pred_check
          %p363 = pneg %p70
        $region62: #{tpu_custom_call.1} parent=55 // pred_check_branch
          %365 = sbr.rel (%p363) target = $region64
        $region63: #{tpu_custom_call.1} parent=55 // pred_region
          %366 = dma.done [#allocation6], 1536
        $region64: #{tpu_custom_call.1} parent=55 // pred_fallthru
          _
        // Predicated region
        $region65: #{tpu_custom_call.1} parent=55 // pred_check
          %p367 = pneg %p112
        $region66: #{tpu_custom_call.1} parent=55 // pred_check_branch
          %369 = sbr.rel (%p367) target = $region68
        $region67: #{tpu_custom_call.1} parent=55 // pred_region
          %370 = dma.done [#allocation6], 3072
        $region68: #{tpu_custom_call.1} parent=55 // pred_fallthru
          _
        // Predicated region
        $region69: #{tpu_custom_call.1} parent=55 // pred_check
          %p371 = pneg %p154
        $region70: #{tpu_custom_call.1} parent=55 // pred_check_branch
          %373 = sbr.rel (%p371) target = $region72
        $region71: #{tpu_custom_call.1} parent=55 // pred_region
          %374 = dma.done [#allocation9], 16384
        $region72: #{tpu_custom_call.1} parent=55 // pred_fallthru
          _
        // Predicated region
        $region73: #{tpu_custom_call.1} parent=55 // pred_check
          %p375 = pneg %p196
        $region74: #{tpu_custom_call.1} parent=55 // pred_check_branch
          %377 = sbr.rel (%p375) target = $region76
        $region75: #{tpu_custom_call.1} parent=55 // pred_region
          %378 = dma.done [#allocation9], 1024
        $region76: #{tpu_custom_call.1} parent=55 // pred_fallthru
          _
        %s379 = sand.u32 %s36, 1
        %s380 = scalar_lea.sflag [#allocation3], %s379
        %s381 = sand.u32 %s36, 1
        %s382 = smul.addr %s381, 16
        %s383 = scalar_lea.vmem [#allocation2], %s382
        %p384 = pneg %p49
        %p385 = pneg %p46
        %p386 = pneg %p70
        %p387 = pneg %p67
        %p388 = pneg %p91
        %p389 = pneg %p88
        %p390 = pneg %p112
        %p391 = pneg %p109
        %p392 = pneg %p133
        %p393 = pneg %p130
        %p394 = pneg %p154
        %p395 = pneg %p151
        %p396 = pneg %p175
        %p397 = pneg %p172
        %p398 = pneg %p196
        %p399 = pneg %p193
        %p400 = pneg %p217
        %p401 = pneg %p214
        %p402 = pneg %p243
        %p403 = pneg %p240
        %s404 = sand.u32 %s230, 1
        %s405 = scalar_lea.sflag [#allocation4], %s404
        %s406 = sand.u32 %s230, 1
        %s407 = scalar_lea.vmem [#allocation11], %s406
        %v409 = vld [vmem:[%s358] sm:$0xff]
        %v410 = vld [vmem:[%s358 + $0x8] sm:$0xff]
        %v411 = vrot.slane %v409, 7
        %v412 = vrot.slane %v410, 7
        %v413 = vlaneseq
        %v414 = vshrl.u32 %v413, 7
        %vm415 = vcmp.lt.s32.totalorder %v414, 1
        %v416 = vsel %vm415, %v411, %v412
        %v417 = vsel %vm415, %v412, %v411
        %v418 = vadd.s32 %v414, 8
        %vm419 = vcmp.ge.s32.totalorder %v414, 1
        %vm420 = vcmp.ge.s32.totalorder %v418, 1
        %v421 = vsel %vm419, %v417, 0.0
        %v422 = vsel %vm420, %v416, 0.0
        %v423 = vrot.slane %v409, 1
        %v424 = vrot.slane %v410, 1
        %vm425 = vcmp.lt.s32.totalorder %v414, 7
        %v426 = vsel %vm425, %v423, %v424
        %v427 = vsel %vm425, %v424, %v423
        %vm428 = vcmp.lt.s32.totalorder %v414, 15
        %vm429 = vcmp.lt.s32.totalorder %v418, 15
        %v430 = vsel %vm428, %v426, 0.0
        %v431 = vsel %vm429, %v427, 0.0
        %434 = vrot.lane.b32.xlu0 %v409, 64
        %v435 = vpop.permute.xlu0 %434
        %436 = vrot.lane.b32.xlu0 %v410, 64
        %v437 = vpop.permute.xlu0 %436
        %vm440 = vcmask 523264
        %v441 = vsel %vm440, %v421, %v435
        %v442 = vsel %vm440, %v422, %v437
        %v443 = vpack.c.bf16 %v442, %v441
        %v444 = vpack.c.bf16 %v431, %v430
        %v445 = vld [vmem:[#allocation5] sm:$0xf]
        %v446 = vld [vmem:[#allocation5 + $0x4] sm:$0xf]
        %v447 = vld [vmem:[#allocation5 + $0x8] sm:$0xf]
        %v448 = vld [vmem:[#allocation5 + $0xc] sm:$0xf]
        %v449 = vld [vmem:[#allocation5 + $0x10] sm:$0xf]
        %v450 = vld [vmem:[#allocation5 + $0x14] sm:$0xf]
        %v451 = vld [vmem:[#allocation5 + $0x18] sm:$0xf]
        %v452 = vld [vmem:[#allocation5 + $0x1c] sm:$0xf]
        %v453 = vld [vmem:[#allocation5 + $0x20] sm:$0xf]
        %v454 = vld [vmem:[#allocation5 + $0x24] sm:$0xf]
        %v455 = vld [vmem:[#allocation5 + $0x28] sm:$0xf]
        %v456 = vld [vmem:[#allocation5 + $0x2c] sm:$0xf]
        %v457 = vld [vmem:[#allocation5 + $0x30] sm:$0xf]
        %v458 = vld [vmem:[#allocation5 + $0x34] sm:$0xf]
        %v459 = vld [vmem:[#allocation5 + $0x38] sm:$0xf]
        %v460 = vld [vmem:[#allocation5 + $0x3c] sm:$0xf]
        %v461 = vld [vmem:[#allocation5 + $0x40] sm:$0xf]
        %v462 = vld [vmem:[#allocation5 + $0x44] sm:$0xf]
        %v463 = vld [vmem:[#allocation5 + $0x48] sm:$0xf]
        %v464 = vld [vmem:[#allocation5 + $0x4c] sm:$0xf]
        %v465 = vld [vmem:[#allocation5 + $0x50] sm:$0xf]
        %v466 = vld [vmem:[#allocation5 + $0x54] sm:$0xf]
        %v467 = vld [vmem:[#allocation5 + $0x58] sm:$0xf]
        %v468 = vld [vmem:[#allocation5 + $0x5c] sm:$0xf]
        %v469 = vld [vmem:[%s2] sm:$0x1]
        %v471 = vlaneseq
        %v472 = vshrl.u32 %v471, 7
        %v473 = vsub.s32 0, %v472
        %v474 = vrot.slane %v469, %v473
        %v500 = vunpack.c.l.b16 %v445
        %v501 = vunpack.c.l.b16 %v446
        %v502 = vunpack.c.l.b16 %v447
        %v503 = vunpack.c.l.b16 %v448
        %v504 = vunpack.c.l.b16 %v449
        %v505 = vunpack.c.l.b16 %v450
        %v506 = vunpack.c.l.b16 %v451
        %v507 = vunpack.c.l.b16 %v452
        %v508 = vunpack.c.l.b16 %v453
        %v509 = vunpack.c.l.b16 %v454
        %v510 = vunpack.c.l.b16 %v455
        %v511 = vunpack.c.l.b16 %v456
        %v512 = vunpack.c.l.b16 %v457
        %v513 = vunpack.c.l.b16 %v458
        %v514 = vunpack.c.l.b16 %v459
        %v515 = vunpack.c.l.b16 %v460
        %v516 = vunpack.c.l.b16 %v461
        %v517 = vunpack.c.l.b16 %v462
        %v518 = vunpack.c.l.b16 %v463
        %v519 = vunpack.c.l.b16 %v464
        %v520 = vunpack.c.l.b16 %v465
        %v521 = vunpack.c.l.b16 %v466
        %v522 = vunpack.c.l.b16 %v467
        %v523 = vunpack.c.l.b16 %v468
        %v524 = vpack.c.b16 %v501, %v500
        %v525 = vpack.c.b16 %v503, %v502
        %v526 = vpack.c.b16 %v505, %v504
        %v527 = vpack.c.b16 %v507, %v506
        %v528 = vpack.c.b16 %v509, %v508
        %v529 = vpack.c.b16 %v511, %v510
        %v530 = vpack.c.b16 %v513, %v512
        %v531 = vpack.c.b16 %v515, %v514
        %v532 = vpack.c.b16 %v517, %v516
        %v533 = vpack.c.b16 %v519, %v518
        %v534 = vpack.c.b16 %v521, %v520
        %v535 = vpack.c.b16 %v523, %v522
        %v549 = vsel %vm440, %v444, 0
        %551 = vmatprep.subr.bf16.mxu0 0
        %552 = vmatpush1.bf16.msra.mxu0 %v524
        %553 = vmatprep.subr.bf16.mxu0 0
        %554 = vmatpush1.bf16.msra.mxu0 %v525
        %555 = vmatprep.subr.bf16.mxu0 0
        %556 = vmatpush1.bf16.msra.mxu0 %v526
        %557 = vmatprep.subr.bf16.mxu0 0
        %558 = vmatpush1.bf16.msra.mxu0 %v527
        %559 = vmatprep.subr.bf16.mxu0 0
        %560 = vmatpush1.bf16.msra.mxu0 %v528
        %561 = vmatprep.subr.bf16.mxu0 0
        %562 = vmatpush1.bf16.msra.mxu0 %v529
        %563 = vmatprep.subr.bf16.mxu0 0
        %564 = vmatpush1.bf16.msra.mxu0 %v530
        %565 = vmatprep.subr.bf16.mxu0 0
        %566 = vmatpush1.bf16.msra.mxu0 %v531
        %567 = vmatprep.subr.bf16.mxu0 0
        %568 = vmatpush1.bf16.msra.mxu0 %v532
        %569 = vmatprep.subr.bf16.mxu0 0
        %570 = vmatpush1.bf16.msra.mxu0 %v533
        %571 = vmatprep.subr.bf16.mxu0 0
        %572 = vmatpush1.bf16.msra.mxu0 %v534
        %573 = vmatprep.subr.bf16.mxu0 0
        %574 = vmatpush1.bf16.msra.mxu0 %v535
        %575 = vmatprep.subr.bf16.mxu0 0
        %576 = vmatpush1.bf16.msra.mxu0 0
        %577 = vmatprep.subr.bf16.mxu0 0
        %578 = vmatpush1.bf16.msra.mxu0 0
        %579 = vmatprep.subr.bf16.mxu0 0
        %580 = vmatpush1.bf16.msra.mxu0 0
        %581 = vmatprep.subr.bf16.mxu0 0
        %582 = vmatpush1.bf16.msra.mxu0 0
        %583 = vmatprep.mubr.bf16.mxu0 %v549
        %584 = vmatmul.mubr.bf16.gmra.mrb[0].mxu0 %v443
        %v585 = vpop.f32.mrb[0].mxu0
        %v586 = vadd.f32 %v474, %v585
        %v587 = vpop.f32.mrb[0].mxu0
        %v588 = vpop.f32.mrb[0].mxu0
        %v589 = vadd.f32 %v474, %v588
        %v590 = vpop.f32.mrb[0].mxu0
        %591 = vdwg.mxu0
        %v592 = vrot.slane %v586, 7
        %v593 = vrot.slane %v589, 7
        %v594 = vsel %vm415, %v592, %v593
        %v595 = vsel %vm415, %v593, %v592
        %v596 = vsel %vm419, %v595, 0.0
        %v597 = vsel %vm420, %v594, 0.0
        %v598 = vadd.f32 %v586, %v596
        %v599 = vadd.f32 %v589, %v597
        %v600 = vrot.slane %v586, 1
        %v601 = vrot.slane %v589, 1
        %v602 = vsel %vm425, %v600, %v601
        %v603 = vsel %vm425, %v601, %v600
        %v604 = vsel %vm428, %v602, 0.0
        %v605 = vsel %vm429, %v603, 0.0
        %v606 = vadd.f32 %v598, %v604
        %v607 = vadd.f32 %v599, %v605
        %v608 = vrot.slane %v606, 7
        %v609 = vrot.slane %v607, 7
        %v610 = vsel %vm415, %v608, %v609
        %v611 = vsel %vm415, %v609, %v608
        %v612 = vsel %vm419, %v611, 0.0
        %v613 = vsel %vm420, %v610, 0.0
        %v614 = vrot.slane %v606, 1
        %v615 = vrot.slane %v607, 1
        %v616 = vsel %vm425, %v614, %v615
        %v617 = vsel %vm425, %v615, %v614
        %v618 = vsel %vm428, %v616, 0.0
        %v619 = vsel %vm429, %v617, 0.0
        %v620 = vpack.c.bf16 %v613, %v612
        %v621 = vpack.c.bf16 %v607, %v606
        %v622 = vpack.c.bf16 %v619, %v618
        %v623 = vld [vmem:[#allocation7] sm:$0xf]
        %v624 = vld [vmem:[#allocation7 + $0x4] sm:$0xf]
        %v625 = vld [vmem:[#allocation7 + $0x8] sm:$0xf]
        %v626 = vld [vmem:[#allocation7 + $0xc] sm:$0xf]
        %v627 = vld [vmem:[#allocation7 + $0x10] sm:$0xf]
        %v628 = vld [vmem:[#allocation7 + $0x14] sm:$0xf]
        %v629 = vld [vmem:[#allocation7 + $0x18] sm:$0xf]
        %v630 = vld [vmem:[#allocation7 + $0x1c] sm:$0xf]
        %v631 = vld [vmem:[#allocation7 + $0x20] sm:$0xf]
        %v632 = vld [vmem:[#allocation7 + $0x24] sm:$0xf]
        %v633 = vld [vmem:[#allocation7 + $0x28] sm:$0xf]
        %v634 = vld [vmem:[#allocation7 + $0x2c] sm:$0xf]
        %v635 = vld [vmem:[#allocation7 + $0x30] sm:$0xf]
        %v636 = vld [vmem:[#allocation7 + $0x34] sm:$0xf]
        %v637 = vld [vmem:[#allocation7 + $0x38] sm:$0xf]
        %v638 = vld [vmem:[#allocation7 + $0x3c] sm:$0xf]
        %v639 = vld [vmem:[#allocation7 + $0x40] sm:$0xf]
        %v640 = vld [vmem:[#allocation7 + $0x44] sm:$0xf]
        %v641 = vld [vmem:[#allocation7 + $0x48] sm:$0xf]
        %v642 = vld [vmem:[#allocation7 + $0x4c] sm:$0xf]
        %v643 = vld [vmem:[#allocation7 + $0x50] sm:$0xf]
        %v644 = vld [vmem:[#allocation7 + $0x54] sm:$0xf]
        %v645 = vld [vmem:[#allocation7 + $0x58] sm:$0xf]
        %v646 = vld [vmem:[#allocation7 + $0x5c] sm:$0xf]
        %v647 = vld [vmem:[#allocation7 + $0x60] sm:$0xf]
        %v648 = vld [vmem:[#allocation7 + $0x64] sm:$0xf]
        %v649 = vld [vmem:[#allocation7 + $0x68] sm:$0xf]
        %v650 = vld [vmem:[#allocation7 + $0x6c] sm:$0xf]
        %v651 = vld [vmem:[#allocation7 + $0x70] sm:$0xf]
        %v652 = vld [vmem:[#allocation7 + $0x74] sm:$0xf]
        %v653 = vld [vmem:[#allocation7 + $0x78] sm:$0xf]
        %v654 = vld [vmem:[#allocation7 + $0x7c] sm:$0xf]
        %v655 = vld [vmem:[#allocation7 + $0x80] sm:$0xf]
        %v656 = vld [vmem:[#allocation7 + $0x84] sm:$0xf]
        %v657 = vld [vmem:[#allocation7 + $0x88] sm:$0xf]
        %v658 = vld [vmem:[#allocation7 + $0x8c] sm:$0xf]
        %v659 = vld [vmem:[#allocation7 + $0x90] sm:$0xf]
        %v660 = vld [vmem:[#allocation7 + $0x94] sm:$0xf]
        %v661 = vld [vmem:[#allocation7 + $0x98] sm:$0xf]
        %v662 = vld [vmem:[#allocation7 + $0x9c] sm:$0xf]
        %v663 = vld [vmem:[#allocation7 + $0xa0] sm:$0xf]
        %v664 = vld [vmem:[#allocation7 + $0xa4] sm:$0xf]
        %v665 = vld [vmem:[#allocation7 + $0xa8] sm:$0xf]
        %v666 = vld [vmem:[#allocation7 + $0xac] sm:$0xf]
        %v667 = vld [vmem:[#allocation7 + $0xb0] sm:$0xf]
        %v668 = vld [vmem:[#allocation7 + $0xb4] sm:$0xf]
        %v669 = vld [vmem:[#allocation7 + $0xb8] sm:$0xf]
        %v670 = vld [vmem:[#allocation7 + $0xbc] sm:$0xf]
        %v671 = vld [vmem:[%s4] sm:$0x1]
        %v673 = vlaneseq
        %v674 = vshrl.u32 %v673, 7
        %v675 = vsub.s32 0, %v674
        %v676 = vrot.slane %v671, %v675
        %v726 = vunpack.c.l.b16 %v623
        %v727 = vunpack.c.l.b16 %v624
        %v728 = vunpack.c.l.b16 %v625
        %v729 = vunpack.c.l.b16 %v626
        %v730 = vunpack.c.l.b16 %v627
        %v731 = vunpack.c.l.b16 %v628
        %v732 = vunpack.c.l.b16 %v629
        %v733 = vunpack.c.l.b16 %v630
        %v734 = vunpack.c.l.b16 %v631
        %v735 = vunpack.c.l.b16 %v632
        %v736 = vunpack.c.l.b16 %v633
        %v737 = vunpack.c.l.b16 %v634
        %v738 = vunpack.c.l.b16 %v635
        %v739 = vunpack.c.l.b16 %v636
        %v740 = vunpack.c.l.b16 %v637
        %v741 = vunpack.c.l.b16 %v638
        %v742 = vunpack.c.l.b16 %v639
        %v743 = vunpack.c.l.b16 %v640
        %v744 = vunpack.c.l.b16 %v641
        %v745 = vunpack.c.l.b16 %v642
        %v746 = vunpack.c.l.b16 %v643
        %v747 = vunpack.c.l.b16 %v644
        %v748 = vunpack.c.l.b16 %v645
        %v749 = vunpack.c.l.b16 %v646
        %v750 = vunpack.c.l.b16 %v647
        %v751 = vunpack.c.l.b16 %v648
        %v752 = vunpack.c.l.b16 %v649
        %v753 = vunpack.c.l.b16 %v650
        %v754 = vunpack.c.l.b16 %v651
        %v755 = vunpack.c.l.b16 %v652
        %v756 = vunpack.c.l.b16 %v653
        %v757 = vunpack.c.l.b16 %v654
        %v758 = vunpack.c.l.b16 %v655
        %v759 = vunpack.c.l.b16 %v656
        %v760 = vunpack.c.l.b16 %v657
        %v761 = vunpack.c.l.b16 %v658
        %v762 = vunpack.c.l.b16 %v659
        %v763 = vunpack.c.l.b16 %v660
        %v764 = vunpack.c.l.b16 %v661
        %v765 = vunpack.c.l.b16 %v662
        %v766 = vunpack.c.l.b16 %v663
        %v767 = vunpack.c.l.b16 %v664
        %v768 = vunpack.c.l.b16 %v665
        %v769 = vunpack.c.l.b16 %v666
        %v770 = vunpack.c.l.b16 %v667
        %v771 = vunpack.c.l.b16 %v668
        %v772 = vunpack.c.l.b16 %v669
        %v773 = vunpack.c.l.b16 %v670
        %v774 = vpack.c.b16 %v727, %v726
        %v775 = vpack.c.b16 %v729, %v728
        %v776 = vpack.c.b16 %v731, %v730
        %v777 = vpack.c.b16 %v733, %v732
        %v778 = vpack.c.b16 %v735, %v734
        %v779 = vpack.c.b16 %v737, %v736
        %v780 = vpack.c.b16 %v739, %v738
        %v781 = vpack.c.b16 %v741, %v740
        %v782 = vpack.c.b16 %v743, %v742
        %v783 = vpack.c.b16 %v745, %v744
        %v784 = vpack.c.b16 %v747, %v746
        %v785 = vpack.c.b16 %v749, %v748
        %v786 = vpack.c.b16 %v751, %v750
        %v787 = vpack.c.b16 %v753, %v752
        %v788 = vpack.c.b16 %v755, %v754
        %v789 = vpack.c.b16 %v757, %v756
        %v790 = vpack.c.b16 %v759, %v758
        %v791 = vpack.c.b16 %v761, %v760
        %v792 = vpack.c.b16 %v763, %v762
        %v793 = vpack.c.b16 %v765, %v764
        %v794 = vpack.c.b16 %v767, %v766
        %v795 = vpack.c.b16 %v769, %v768
        %v796 = vpack.c.b16 %v771, %v770
        %v797 = vpack.c.b16 %v773, %v772
        %822 = vmatprep.subr.bf16.mxu0 0
        %823 = vmatpush1.bf16.msra.mxu0 %v774
        %824 = vmatprep.subr.bf16.mxu0 0
        %825 = vmatpush1.bf16.msra.mxu0 %v775
        %826 = vmatprep.subr.bf16.mxu0 0
        %827 = vmatpush1.bf16.msra.mxu0 %v776
        %828 = vmatprep.subr.bf16.mxu0 0
        %829 = vmatpush1.bf16.msra.mxu0 %v777
        %830 = vmatprep.subr.bf16.mxu0 0
        %831 = vmatpush1.bf16.msra.mxu0 %v778
        %832 = vmatprep.subr.bf16.mxu0 0
        %833 = vmatpush1.bf16.msra.mxu0 %v779
        %834 = vmatprep.subr.bf16.mxu0 0
        %835 = vmatpush1.bf16.msra.mxu0 %v780
        %836 = vmatprep.subr.bf16.mxu0 0
        %837 = vmatpush1.bf16.msra.mxu0 %v781
        %838 = vmatprep.subr.bf16.mxu0 0
        %839 = vmatpush1.bf16.msra.mxu0 %v782
        %840 = vmatprep.subr.bf16.mxu0 0
        %841 = vmatpush1.bf16.msra.mxu0 %v783
        %842 = vmatprep.subr.bf16.mxu0 0
        %843 = vmatpush1.bf16.msra.mxu0 %v784
        %844 = vmatprep.subr.bf16.mxu0 0
        %845 = vmatpush1.bf16.msra.mxu0 %v785
        %846 = vmatprep.subr.bf16.mxu0 0
        %847 = vmatpush1.bf16.msra.mxu0 %v786
        %848 = vmatprep.subr.bf16.mxu0 0
        %849 = vmatpush1.bf16.msra.mxu0 %v787
        %850 = vmatprep.subr.bf16.mxu0 0
        %851 = vmatpush1.bf16.msra.mxu0 %v788
        %852 = vmatprep.subr.bf16.mxu0 0
        %853 = vmatpush1.bf16.msra.mxu0 %v789
        %854 = vmatprep.mubr.bf16.mxu0 %v621
        %855 = vmatmul.mubr.bf16.gmra.mrb[0].mxu0 %v620
        %v856 = vpop.f32.mrb[0].mxu0
        %v857 = vadd.f32 %v676, %v856
        %v858 = vpop.f32.mrb[0].mxu0
        %v859 = vpop.f32.mrb[0].mxu0
        %v860 = vadd.f32 %v676, %v859
        %v861 = vpop.f32.mrb[0].mxu0
        %862 = vdwg.mxu0
        %863 = vmatprep.subr.bf16.mxu0 0
        %864 = vmatpush1.bf16.msra.mxu0 %v790
        %865 = vmatprep.subr.bf16.mxu0 0
        %866 = vmatpush1.bf16.msra.mxu0 %v791
        %867 = vmatprep.subr.bf16.mxu0 0
        %868 = vmatpush1.bf16.msra.mxu0 %v792
        %869 = vmatprep.subr.bf16.mxu0 0
        %870 = vmatpush1.bf16.msra.mxu0 %v793
        %871 = vmatprep.subr.bf16.mxu0 0
        %872 = vmatpush1.bf16.msra.mxu0 %v794
        %873 = vmatprep.subr.bf16.mxu0 0
        %874 = vmatpush1.bf16.msra.mxu0 %v795
        %875 = vmatprep.subr.bf16.mxu0 0
        %876 = vmatpush1.bf16.msra.mxu0 %v796
        %877 = vmatprep.subr.bf16.mxu0 0
        %878 = vmatpush1.bf16.msra.mxu0 %v797
        %879 = vmatprep.subr.bf16.mxu0 0
        %880 = vmatpush1.bf16.msra.mxu0 0
        %881 = vmatprep.subr.bf16.mxu0 0
        %882 = vmatpush1.bf16.msra.mxu0 0
        %883 = vmatprep.subr.bf16.mxu0 0
        %884 = vmatpush1.bf16.msra.mxu0 0
        %885 = vmatprep.subr.bf16.mxu0 0
        %886 = vmatpush1.bf16.msra.mxu0 0
        %887 = vmatprep.subr.bf16.mxu0 0
        %888 = vmatpush1.bf16.msra.mxu0 0
        %889 = vmatprep.subr.bf16.mxu0 0
        %890 = vmatpush1.bf16.msra.mxu0 0
        %891 = vmatprep.subr.bf16.mxu0 0
        %892 = vmatpush1.bf16.msra.mxu0 0
        %893 = vmatprep.subr.bf16.mxu0 0
        %894 = vmatpush1.bf16.msra.mxu0 0
        %895 = vmatprep.mubr.bf16.mxu0 0
        %896 = vmatmul.mubr.bf16.gmra.mrb[0].mxu0 %v622
        %v897 = vpop.f32.mrb[0].mxu0
        %v898 = vadd.f32 %v857, %v897
        %v899 = vpop.f32.mrb[0].mxu0
        %v900 = vpop.f32.mrb[0].mxu0
        %v901 = vadd.f32 %v860, %v900
        %v902 = vpop.f32.mrb[0].mxu0
        %903 = vdwg.mxu0
        %v904 = vrot.slane %v898, 7
        %v905 = vrot.slane %v901, 7
        %v906 = vsel %vm415, %v904, %v905
        %v907 = vsel %vm415, %v905, %v904
        %v908 = vsel %vm419, %v907, 0.0
        %v909 = vsel %vm420, %v906, 0.0
        %v910 = vadd.f32 %v898, %v908
        %v911 = vadd.f32 %v901, %v909
        %v912 = vrot.slane %v898, 1
        %v913 = vrot.slane %v901, 1
        %v914 = vsel %vm425, %v912, %v913
        %v915 = vsel %vm425, %v913, %v912
        %v916 = vsel %vm428, %v914, 0.0
        %v917 = vsel %vm429, %v915, 0.0
        %v918 = vadd.f32 %v910, %v916
        %v919 = vadd.f32 %v911, %v917
        %v921 = vrot.slane %v918, 1
        %v923 = vrot.slane %v918, 2
        %v925 = vrot.slane %v918, 3
        %v927 = vrot.slane %v918, 4
        %v929 = vrot.slane %v918, 5
        %v931 = vrot.slane %v918, 6
        %v933 = vrot.slane %v918, 7
        %v936 = vrot.slane %v919, 1
        %v938 = vrot.slane %v919, 2
        %v940 = vrot.slane %v919, 3
        %v942 = vrot.slane %v919, 4
        %v944 = vrot.slane %v919, 5
        %v946 = vrot.slane %v919, 6
        %v948 = vrot.slane %v919, 7
        %v950 = vpack.c.bf16 %v918, %v918
        %v951 = vpack.c.bf16 %v921, %v921
        %v952 = vpack.c.bf16 %v923, %v923
        %v953 = vpack.c.bf16 %v925, %v925
        %v954 = vpack.c.bf16 %v927, %v927
        %v955 = vpack.c.bf16 %v929, %v929
        %v956 = vpack.c.bf16 %v931, %v931
        %v957 = vpack.c.bf16 %v933, %v933
        %v958 = vpack.c.bf16 %v919, %v919
        %v959 = vpack.c.bf16 %v936, %v936
        %v960 = vpack.c.bf16 %v938, %v938
        %v961 = vpack.c.bf16 %v940, %v940
        %v962 = vpack.c.bf16 %v942, %v942
        %v963 = vpack.c.bf16 %v944, %v944
        %v964 = vpack.c.bf16 %v946, %v946
        %v965 = vpack.c.bf16 %v948, %v948
        %v966 = vld [vmem:[#allocation8] sm:$0xf]
        %v967 = vld [vmem:[#allocation8 + $0x4] sm:$0xf]
        %v968 = vld [vmem:[#allocation8 + $0x8] sm:$0xf]
        %v969 = vld [vmem:[#allocation8 + $0xc] sm:$0xf]
        %v970 = vld [vmem:[#allocation8 + $0x10] sm:$0xf]
        %v971 = vld [vmem:[#allocation8 + $0x14] sm:$0xf]
        %v972 = vld [vmem:[#allocation8 + $0x18] sm:$0xf]
        %v973 = vld [vmem:[#allocation8 + $0x1c] sm:$0xf]
        %v974 = vld [vmem:[#allocation8 + $0x20] sm:$0xf]
        %v975 = vld [vmem:[#allocation8 + $0x24] sm:$0xf]
        %v976 = vld [vmem:[#allocation8 + $0x28] sm:$0xf]
        %v977 = vld [vmem:[#allocation8 + $0x2c] sm:$0xf]
        %v978 = vld [vmem:[#allocation8 + $0x30] sm:$0xf]
        %v979 = vld [vmem:[#allocation8 + $0x34] sm:$0xf]
        %v980 = vld [vmem:[#allocation8 + $0x38] sm:$0xf]
        %v981 = vld [vmem:[#allocation8 + $0x3c] sm:$0xf]
        %v982 = vld [vmem:[#allocation8 + $0x40] sm:$0xf]
        %v983 = vld [vmem:[#allocation8 + $0x44] sm:$0xf]
        %v984 = vld [vmem:[#allocation8 + $0x48] sm:$0xf]
        %v985 = vld [vmem:[#allocation8 + $0x4c] sm:$0xf]
        %v986 = vld [vmem:[#allocation8 + $0x50] sm:$0xf]
        %v987 = vld [vmem:[#allocation8 + $0x54] sm:$0xf]
        %v988 = vld [vmem:[#allocation8 + $0x58] sm:$0xf]
        %v989 = vld [vmem:[#allocation8 + $0x5c] sm:$0xf]
        %v990 = vld [vmem:[#allocation8 + $0x60] sm:$0xf]
        %v991 = vld [vmem:[#allocation8 + $0x64] sm:$0xf]
        %v992 = vld [vmem:[#allocation8 + $0x68] sm:$0xf]
        %v993 = vld [vmem:[#allocation8 + $0x6c] sm:$0xf]
        %v994 = vld [vmem:[#allocation8 + $0x70] sm:$0xf]
        %v995 = vld [vmem:[#allocation8 + $0x74] sm:$0xf]
        %v996 = vld [vmem:[#allocation8 + $0x78] sm:$0xf]
        %v997 = vld [vmem:[#allocation8 + $0x7c] sm:$0xf]
        %v998 = vld [vmem:[#allocation8 + $0x80] sm:$0xf]
        %v999 = vld [vmem:[#allocation8 + $0x84] sm:$0xf]
        %v1000 = vld [vmem:[#allocation8 + $0x88] sm:$0xf]
        %v1001 = vld [vmem:[#allocation8 + $0x8c] sm:$0xf]
        %v1002 = vld [vmem:[#allocation8 + $0x90] sm:$0xf]
        %v1003 = vld [vmem:[#allocation8 + $0x94] sm:$0xf]
        %v1004 = vld [vmem:[#allocation8 + $0x98] sm:$0xf]
        %v1005 = vld [vmem:[#allocation8 + $0x9c] sm:$0xf]
        %v1006 = vld [vmem:[#allocation8 + $0xa0] sm:$0xf]
        %v1007 = vld [vmem:[#allocation8 + $0xa4] sm:$0xf]
        %v1008 = vld [vmem:[#allocation8 + $0xa8] sm:$0xf]
        %v1009 = vld [vmem:[#allocation8 + $0xac] sm:$0xf]
        %v1010 = vld [vmem:[#allocation8 + $0xb0] sm:$0xf]
        %v1011 = vld [vmem:[#allocation8 + $0xb4] sm:$0xf]
        %v1012 = vld [vmem:[#allocation8 + $0xb8] sm:$0xf]
        %v1013 = vld [vmem:[#allocation8 + $0xbc] sm:$0xf]
        %v1014 = vld [vmem:[#allocation8 + $0xc0] sm:$0xf]
        %v1015 = vld [vmem:[#allocation8 + $0xc4] sm:$0xf]
        %v1016 = vld [vmem:[#allocation8 + $0xc8] sm:$0xf]
        %v1017 = vld [vmem:[#allocation8 + $0xcc] sm:$0xf]
        %v1018 = vld [vmem:[#allocation8 + $0xd0] sm:$0xf]
        %v1019 = vld [vmem:[#allocation8 + $0xd4] sm:$0xf]
        %v1020 = vld [vmem:[#allocation8 + $0xd8] sm:$0xf]
        %v1021 = vld [vmem:[#allocation8 + $0xdc] sm:$0xf]
        %v1022 = vld [vmem:[#allocation8 + $0xe0] sm:$0xf]
        %v1023 = vld [vmem:[#allocation8 + $0xe4] sm:$0xf]
        %v1024 = vld [vmem:[#allocation8 + $0xe8] sm:$0xf]
        %v1025 = vld [vmem:[#allocation8 + $0xec] sm:$0xf]
        %v1026 = vld [vmem:[#allocation8 + $0xf0] sm:$0xf]
        %v1027 = vld [vmem:[#allocation8 + $0xf4] sm:$0xf]
        %v1028 = vld [vmem:[#allocation8 + $0xf8] sm:$0xf]
        %v1029 = vld [vmem:[#allocation8 + $0xfc] sm:$0xf]
        %v1030 = vld [vmem:[#allocation8 + $0x100] sm:$0xf]
        %v1031 = vld [vmem:[#allocation8 + $0x104] sm:$0xf]
        %v1032 = vld [vmem:[#allocation8 + $0x108] sm:$0xf]
        %v1033 = vld [vmem:[#allocation8 + $0x10c] sm:$0xf]
        %v1034 = vld [vmem:[#allocation8 + $0x110] sm:$0xf]
        %v1035 = vld [vmem:[#allocation8 + $0x114] sm:$0xf]
        %v1036 = vld [vmem:[#allocation8 + $0x118] sm:$0xf]
        %v1037 = vld [vmem:[#allocation8 + $0x11c] sm:$0xf]
        %v1038 = vld [vmem:[#allocation8 + $0x120] sm:$0xf]
        %v1039 = vld [vmem:[#allocation8 + $0x124] sm:$0xf]
        %v1040 = vld [vmem:[#allocation8 + $0x128] sm:$0xf]
        %v1041 = vld [vmem:[#allocation8 + $0x12c] sm:$0xf]
        %v1042 = vld [vmem:[#allocation8 + $0x130] sm:$0xf]
        %v1043 = vld [vmem:[#allocation8 + $0x134] sm:$0xf]
        %v1044 = vld [vmem:[#allocation8 + $0x138] sm:$0xf]
        %v1045 = vld [vmem:[#allocation8 + $0x13c] sm:$0xf]
        %v1046 = vld [vmem:[#allocation8 + $0x140] sm:$0xf]
        %v1047 = vld [vmem:[#allocation8 + $0x144] sm:$0xf]
        %v1048 = vld [vmem:[#allocation8 + $0x148] sm:$0xf]
        %v1049 = vld [vmem:[#allocation8 + $0x14c] sm:$0xf]
        %v1050 = vld [vmem:[#allocation8 + $0x150] sm:$0xf]
        %v1051 = vld [vmem:[#allocation8 + $0x154] sm:$0xf]
        %v1052 = vld [vmem:[#allocation8 + $0x158] sm:$0xf]
        %v1053 = vld [vmem:[#allocation8 + $0x15c] sm:$0xf]
        %v1054 = vld [vmem:[#allocation8 + $0x160] sm:$0xf]
        %v1055 = vld [vmem:[#allocation8 + $0x164] sm:$0xf]
        %v1056 = vld [vmem:[#allocation8 + $0x168] sm:$0xf]
        %v1057 = vld [vmem:[#allocation8 + $0x16c] sm:$0xf]
        %v1058 = vld [vmem:[#allocation8 + $0x170] sm:$0xf]
        %v1059 = vld [vmem:[#allocation8 + $0x174] sm:$0xf]
        %v1060 = vld [vmem:[#allocation8 + $0x178] sm:$0xf]
        %v1061 = vld [vmem:[#allocation8 + $0x17c] sm:$0xf]
        %v1062 = vld [vmem:[#allocation8 + $0x180] sm:$0xf]
        %v1063 = vld [vmem:[#allocation8 + $0x184] sm:$0xf]
        %v1064 = vld [vmem:[#allocation8 + $0x188] sm:$0xf]
        %v1065 = vld [vmem:[#allocation8 + $0x18c] sm:$0xf]
        %v1066 = vld [vmem:[#allocation8 + $0x190] sm:$0xf]
        %v1067 = vld [vmem:[#allocation8 + $0x194] sm:$0xf]
        %v1068 = vld [vmem:[#allocation8 + $0x198] sm:$0xf]
        %v1069 = vld [vmem:[#allocation8 + $0x19c] sm:$0xf]
        %v1070 = vld [vmem:[#allocation8 + $0x1a0] sm:$0xf]
        %v1071 = vld [vmem:[#allocation8 + $0x1a4] sm:$0xf]
        %v1072 = vld [vmem:[#allocation8 + $0x1a8] sm:$0xf]
        %v1073 = vld [vmem:[#allocation8 + $0x1ac] sm:$0xf]
        %v1074 = vld [vmem:[#allocation8 + $0x1b0] sm:$0xf]
        %v1075 = vld [vmem:[#allocation8 + $0x1b4] sm:$0xf]
        %v1076 = vld [vmem:[#allocation8 + $0x1b8] sm:$0xf]
        %v1077 = vld [vmem:[#allocation8 + $0x1bc] sm:$0xf]
        %v1078 = vld [vmem:[#allocation8 + $0x1c0] sm:$0xf]
        %v1079 = vld [vmem:[#allocation8 + $0x1c4] sm:$0xf]
        %v1080 = vld [vmem:[#allocation8 + $0x1c8] sm:$0xf]
        %v1081 = vld [vmem:[#allocation8 + $0x1cc] sm:$0xf]
        %v1082 = vld [vmem:[#allocation8 + $0x1d0] sm:$0xf]
        %v1083 = vld [vmem:[#allocation8 + $0x1d4] sm:$0xf]
        %v1084 = vld [vmem:[#allocation8 + $0x1d8] sm:$0xf]
        %v1085 = vld [vmem:[#allocation8 + $0x1dc] sm:$0xf]
        %v1086 = vld [vmem:[#allocation8 + $0x1e0] sm:$0xf]
        %v1087 = vld [vmem:[#allocation8 + $0x1e4] sm:$0xf]
        %v1088 = vld [vmem:[#allocation8 + $0x1e8] sm:$0xf]
        %v1089 = vld [vmem:[#allocation8 + $0x1ec] sm:$0xf]
        %v1090 = vld [vmem:[#allocation8 + $0x1f0] sm:$0xf]
        %v1091 = vld [vmem:[#allocation8 + $0x1f4] sm:$0xf]
        %v1092 = vld [vmem:[#allocation8 + $0x1f8] sm:$0xf]
        %v1093 = vld [vmem:[#allocation8 + $0x1fc] sm:$0xf]
        %v1094 = vld [vmem:[#allocation8 + $0x200] sm:$0xf]
        %v1095 = vld [vmem:[#allocation8 + $0x204] sm:$0xf]
        %v1096 = vld [vmem:[#allocation8 + $0x208] sm:$0xf]
        %v1097 = vld [vmem:[#allocation8 + $0x20c] sm:$0xf]
        %v1098 = vld [vmem:[#allocation8 + $0x210] sm:$0xf]
        %v1099 = vld [vmem:[#allocation8 + $0x214] sm:$0xf]
        %v1100 = vld [vmem:[#allocation8 + $0x218] sm:$0xf]
        %v1101 = vld [vmem:[#allocation8 + $0x21c] sm:$0xf]
        %v1102 = vld [vmem:[#allocation8 + $0x220] sm:$0xf]
        %v1103 = vld [vmem:[#allocation8 + $0x224] sm:$0xf]
        %v1104 = vld [vmem:[#allocation8 + $0x228] sm:$0xf]
        %v1105 = vld [vmem:[#allocation8 + $0x22c] sm:$0xf]
        %v1106 = vld [vmem:[#allocation8 + $0x230] sm:$0xf]
        %v1107 = vld [vmem:[#allocation8 + $0x234] sm:$0xf]
        %v1108 = vld [vmem:[#allocation8 + $0x238] sm:$0xf]
        %v1109 = vld [vmem:[#allocation8 + $0x23c] sm:$0xf]
        %v1110 = vld [vmem:[#allocation8 + $0x240] sm:$0xf]
        %v1111 = vld [vmem:[#allocation8 + $0x244] sm:$0xf]
        %v1112 = vld [vmem:[#allocation8 + $0x248] sm:$0xf]
        %v1113 = vld [vmem:[#allocation8 + $0x24c] sm:$0xf]
        %v1114 = vld [vmem:[#allocation8 + $0x250] sm:$0xf]
        %v1115 = vld [vmem:[#allocation8 + $0x254] sm:$0xf]
        %v1116 = vld [vmem:[#allocation8 + $0x258] sm:$0xf]
        %v1117 = vld [vmem:[#allocation8 + $0x25c] sm:$0xf]
        %v1118 = vld [vmem:[#allocation8 + $0x260] sm:$0xf]
        %v1119 = vld [vmem:[#allocation8 + $0x264] sm:$0xf]
        %v1120 = vld [vmem:[#allocation8 + $0x268] sm:$0xf]
        %v1121 = vld [vmem:[#allocation8 + $0x26c] sm:$0xf]
        %v1122 = vld [vmem:[#allocation8 + $0x270] sm:$0xf]
        %v1123 = vld [vmem:[#allocation8 + $0x274] sm:$0xf]
        %v1124 = vld [vmem:[#allocation8 + $0x278] sm:$0xf]
        %v1125 = vld [vmem:[#allocation8 + $0x27c] sm:$0xf]
        %v1126 = vld [vmem:[#allocation8 + $0x280] sm:$0xf]
        %v1127 = vld [vmem:[#allocation8 + $0x284] sm:$0xf]
        %v1128 = vld [vmem:[#allocation8 + $0x288] sm:$0xf]
        %v1129 = vld [vmem:[#allocation8 + $0x28c] sm:$0xf]
        %v1130 = vld [vmem:[#allocation8 + $0x290] sm:$0xf]
        %v1131 = vld [vmem:[#allocation8 + $0x294] sm:$0xf]
        %v1132 = vld [vmem:[#allocation8 + $0x298] sm:$0xf]
        %v1133 = vld [vmem:[#allocation8 + $0x29c] sm:$0xf]
        %v1134 = vld [vmem:[#allocation8 + $0x2a0] sm:$0xf]
        %v1135 = vld [vmem:[#allocation8 + $0x2a4] sm:$0xf]
        %v1136 = vld [vmem:[#allocation8 + $0x2a8] sm:$0xf]
        %v1137 = vld [vmem:[#allocation8 + $0x2ac] sm:$0xf]
        %v1138 = vld [vmem:[#allocation8 + $0x2b0] sm:$0xf]
        %v1139 = vld [vmem:[#allocation8 + $0x2b4] sm:$0xf]
        %v1140 = vld [vmem:[#allocation8 + $0x2b8] sm:$0xf]
        %v1141 = vld [vmem:[#allocation8 + $0x2bc] sm:$0xf]
        %v1142 = vld [vmem:[#allocation8 + $0x2c0] sm:$0xf]
        %v1143 = vld [vmem:[#allocation8 + $0x2c4] sm:$0xf]
        %v1144 = vld [vmem:[#allocation8 + $0x2c8] sm:$0xf]
        %v1145 = vld [vmem:[#allocation8 + $0x2cc] sm:$0xf]
        %v1146 = vld [vmem:[#allocation8 + $0x2d0] sm:$0xf]
        %v1147 = vld [vmem:[#allocation8 + $0x2d4] sm:$0xf]
        %v1148 = vld [vmem:[#allocation8 + $0x2d8] sm:$0xf]
        %v1149 = vld [vmem:[#allocation8 + $0x2dc] sm:$0xf]
        %v1150 = vld [vmem:[#allocation8 + $0x2e0] sm:$0xf]
        %v1151 = vld [vmem:[#allocation8 + $0x2e4] sm:$0xf]
        %v1152 = vld [vmem:[#allocation8 + $0x2e8] sm:$0xf]
        %v1153 = vld [vmem:[#allocation8 + $0x2ec] sm:$0xf]
        %v1154 = vld [vmem:[#allocation8 + $0x2f0] sm:$0xf]
        %v1155 = vld [vmem:[#allocation8 + $0x2f4] sm:$0xf]
        %v1156 = vld [vmem:[#allocation8 + $0x2f8] sm:$0xf]
        %v1157 = vld [vmem:[#allocation8 + $0x2fc] sm:$0xf]
        %v1158 = vld [vmem:[#allocation8 + $0x300] sm:$0xf]
        %v1159 = vld [vmem:[#allocation8 + $0x304] sm:$0xf]
        %v1160 = vld [vmem:[#allocation8 + $0x308] sm:$0xf]
        %v1161 = vld [vmem:[#allocation8 + $0x30c] sm:$0xf]
        %v1162 = vld [vmem:[#allocation8 + $0x310] sm:$0xf]
        %v1163 = vld [vmem:[#allocation8 + $0x314] sm:$0xf]
        %v1164 = vld [vmem:[#allocation8 + $0x318] sm:$0xf]
        %v1165 = vld [vmem:[#allocation8 + $0x31c] sm:$0xf]
        %v1166 = vld [vmem:[#allocation8 + $0x320] sm:$0xf]
        %v1167 = vld [vmem:[#allocation8 + $0x324] sm:$0xf]
        %v1168 = vld [vmem:[#allocation8 + $0x328] sm:$0xf]
        %v1169 = vld [vmem:[#allocation8 + $0x32c] sm:$0xf]
        %v1170 = vld [vmem:[#allocation8 + $0x330] sm:$0xf]
        %v1171 = vld [vmem:[#allocation8 + $0x334] sm:$0xf]
        %v1172 = vld [vmem:[#allocation8 + $0x338] sm:$0xf]
        %v1173 = vld [vmem:[#allocation8 + $0x33c] sm:$0xf]
        %v1174 = vld [vmem:[#allocation8 + $0x340] sm:$0xf]
        %v1175 = vld [vmem:[#allocation8 + $0x344] sm:$0xf]
        %v1176 = vld [vmem:[#allocation8 + $0x348] sm:$0xf]
        %v1177 = vld [vmem:[#allocation8 + $0x34c] sm:$0xf]
        %v1178 = vld [vmem:[#allocation8 + $0x350] sm:$0xf]
        %v1179 = vld [vmem:[#allocation8 + $0x354] sm:$0xf]
        %v1180 = vld [vmem:[#allocation8 + $0x358] sm:$0xf]
        %v1181 = vld [vmem:[#allocation8 + $0x35c] sm:$0xf]
        %v1182 = vld [vmem:[#allocation8 + $0x360] sm:$0xf]
        %v1183 = vld [vmem:[#allocation8 + $0x364] sm:$0xf]
        %v1184 = vld [vmem:[#allocation8 + $0x368] sm:$0xf]
        %v1185 = vld [vmem:[#allocation8 + $0x36c] sm:$0xf]
        %v1186 = vld [vmem:[#allocation8 + $0x370] sm:$0xf]
        %v1187 = vld [vmem:[#allocation8 + $0x374] sm:$0xf]
        %v1188 = vld [vmem:[#allocation8 + $0x378] sm:$0xf]
        %v1189 = vld [vmem:[#allocation8 + $0x37c] sm:$0xf]
        %v1190 = vld [vmem:[#allocation8 + $0x380] sm:$0xf]
        %v1191 = vld [vmem:[#allocation8 + $0x384] sm:$0xf]
        %v1192 = vld [vmem:[#allocation8 + $0x388] sm:$0xf]
        %v1193 = vld [vmem:[#allocation8 + $0x38c] sm:$0xf]
        %v1194 = vld [vmem:[#allocation8 + $0x390] sm:$0xf]
        %v1195 = vld [vmem:[#allocation8 + $0x394] sm:$0xf]
        %v1196 = vld [vmem:[#allocation8 + $0x398] sm:$0xf]
        %v1197 = vld [vmem:[#allocation8 + $0x39c] sm:$0xf]
        %v1198 = vld [vmem:[#allocation8 + $0x3a0] sm:$0xf]
        %v1199 = vld [vmem:[#allocation8 + $0x3a4] sm:$0xf]
        %v1200 = vld [vmem:[#allocation8 + $0x3a8] sm:$0xf]
        %v1201 = vld [vmem:[#allocation8 + $0x3ac] sm:$0xf]
        %v1202 = vld [vmem:[#allocation8 + $0x3b0] sm:$0xf]
        %v1203 = vld [vmem:[#allocation8 + $0x3b4] sm:$0xf]
        %v1204 = vld [vmem:[#allocation8 + $0x3b8] sm:$0xf]
        %v1205 = vld [vmem:[#allocation8 + $0x3bc] sm:$0xf]
        %v1206 = vld [vmem:[#allocation8 + $0x3c0] sm:$0xf]
        %v1207 = vld [vmem:[#allocation8 + $0x3c4] sm:$0xf]
        %v1208 = vld [vmem:[#allocation8 + $0x3c8] sm:$0xf]
        %v1209 = vld [vmem:[#allocation8 + $0x3cc] sm:$0xf]
        %v1210 = vld [vmem:[#allocation8 + $0x3d0] sm:$0xf]
        %v1211 = vld [vmem:[#allocation8 + $0x3d4] sm:$0xf]
        %v1212 = vld [vmem:[#allocation8 + $0x3d8] sm:$0xf]
        %v1213 = vld [vmem:[#allocation8 + $0x3dc] sm:$0xf]
        %v1214 = vld [vmem:[#allocation8 + $0x3e0] sm:$0xf]
        %v1215 = vld [vmem:[#allocation8 + $0x3e4] sm:$0xf]
        %v1216 = vld [vmem:[#allocation8 + $0x3e8] sm:$0xf]
        %v1217 = vld [vmem:[#allocation8 + $0x3ec] sm:$0xf]
        %v1218 = vld [vmem:[#allocation8 + $0x3f0] sm:$0xf]
        %v1219 = vld [vmem:[#allocation8 + $0x3f4] sm:$0xf]
        %v1220 = vld [vmem:[#allocation8 + $0x3f8] sm:$0xf]
        %v1221 = vld [vmem:[#allocation8 + $0x3fc] sm:$0xf]
        %v1222 = vld [vmem:[%s6] sm:$0x1]
        %v1479 = vunpack.c.l.b16 %v966
        %v1480 = vunpack.c.l.b16 %v967
        %v1481 = vunpack.c.l.b16 %v968
        %v1482 = vunpack.c.l.b16 %v969
        %v1483 = vunpack.c.l.b16 %v970
        %v1484 = vunpack.c.l.b16 %v971
        %v1485 = vunpack.c.l.b16 %v972
        %v1486 = vunpack.c.l.b16 %v973
        %v1487 = vunpack.c.l.b16 %v974
        %v1488 = vunpack.c.l.b16 %v975
        %v1489 = vunpack.c.l.b16 %v976
        %v1490 = vunpack.c.l.b16 %v977
        %v1491 = vunpack.c.l.b16 %v978
        %v1492 = vunpack.c.l.b16 %v979
        %v1493 = vunpack.c.l.b16 %v980
        %v1494 = vunpack.c.l.b16 %v981
        %v1495 = vunpack.c.l.b16 %v982
        %v1496 = vunpack.c.l.b16 %v983
        %v1497 = vunpack.c.l.b16 %v984
        %v1498 = vunpack.c.l.b16 %v985
        %v1499 = vunpack.c.l.b16 %v986
        %v1500 = vunpack.c.l.b16 %v987
        %v1501 = vunpack.c.l.b16 %v988
        %v1502 = vunpack.c.l.b16 %v989
        %v1503 = vunpack.c.l.b16 %v990
        %v1504 = vunpack.c.l.b16 %v991
        %v1505 = vunpack.c.l.b16 %v992
        %v1506 = vunpack.c.l.b16 %v993
        %v1507 = vunpack.c.l.b16 %v994
        %v1508 = vunpack.c.l.b16 %v995
        %v1509 = vunpack.c.l.b16 %v996
        %v1510 = vunpack.c.l.b16 %v997
        %v1511 = vunpack.c.l.b16 %v998
        %v1512 = vunpack.c.l.b16 %v999
        %v1513 = vunpack.c.l.b16 %v1000
        %v1514 = vunpack.c.l.b16 %v1001
        %v1515 = vunpack.c.l.b16 %v1002
        %v1516 = vunpack.c.l.b16 %v1003
        %v1517 = vunpack.c.l.b16 %v1004
        %v1518 = vunpack.c.l.b16 %v1005
        %v1519 = vunpack.c.l.b16 %v1006
        %v1520 = vunpack.c.l.b16 %v1007
        %v1521 = vunpack.c.l.b16 %v1008
        %v1522 = vunpack.c.l.b16 %v1009
        %v1523 = vunpack.c.l.b16 %v1010
        %v1524 = vunpack.c.l.b16 %v1011
        %v1525 = vunpack.c.l.b16 %v1012
        %v1526 = vunpack.c.l.b16 %v1013
        %v1527 = vunpack.c.l.b16 %v1014
        %v1528 = vunpack.c.l.b16 %v1015
        %v1529 = vunpack.c.l.b16 %v1016
        %v1530 = vunpack.c.l.b16 %v1017
        %v1531 = vunpack.c.l.b16 %v1018
        %v1532 = vunpack.c.l.b16 %v1019
        %v1533 = vunpack.c.l.b16 %v1020
        %v1534 = vunpack.c.l.b16 %v1021
        %v1535 = vunpack.c.l.b16 %v1022
        %v1536 = vunpack.c.l.b16 %v1023
        %v1537 = vunpack.c.l.b16 %v1024
        %v1538 = vunpack.c.l.b16 %v1025
        %v1539 = vunpack.c.l.b16 %v1026
        %v1540 = vunpack.c.l.b16 %v1027
        %v1541 = vunpack.c.l.b16 %v1028
        %v1542 = vunpack.c.l.b16 %v1029
        %v1543 = vunpack.c.l.b16 %v1030
        %v1544 = vunpack.c.l.b16 %v1031
        %v1545 = vunpack.c.l.b16 %v1032
        %v1546 = vunpack.c.l.b16 %v1033
        %v1547 = vunpack.c.l.b16 %v1034
        %v1548 = vunpack.c.l.b16 %v1035
        %v1549 = vunpack.c.l.b16 %v1036
        %v1550 = vunpack.c.l.b16 %v1037
        %v1551 = vunpack.c.l.b16 %v1038
        %v1552 = vunpack.c.l.b16 %v1039
        %v1553 = vunpack.c.l.b16 %v1040
        %v1554 = vunpack.c.l.b16 %v1041
        %v1555 = vunpack.c.l.b16 %v1042
        %v1556 = vunpack.c.l.b16 %v1043
        %v1557 = vunpack.c.l.b16 %v1044
        %v1558 = vunpack.c.l.b16 %v1045
        %v1559 = vunpack.c.l.b16 %v1046
        %v1560 = vunpack.c.l.b16 %v1047
        %v1561 = vunpack.c.l.b16 %v1048
        %v1562 = vunpack.c.l.b16 %v1049
        %v1563 = vunpack.c.l.b16 %v1050
        %v1564 = vunpack.c.l.b16 %v1051
        %v1565 = vunpack.c.l.b16 %v1052
        %v1566 = vunpack.c.l.b16 %v1053
        %v1567 = vunpack.c.l.b16 %v1054
        %v1568 = vunpack.c.l.b16 %v1055
        %v1569 = vunpack.c.l.b16 %v1056
        %v1570 = vunpack.c.l.b16 %v1057
        %v1571 = vunpack.c.l.b16 %v1058
        %v1572 = vunpack.c.l.b16 %v1059
        %v1573 = vunpack.c.l.b16 %v1060
        %v1574 = vunpack.c.l.b16 %v1061
        %v1575 = vunpack.c.l.b16 %v1062
        %v1576 = vunpack.c.l.b16 %v1063
        %v1577 = vunpack.c.l.b16 %v1064
        %v1578 = vunpack.c.l.b16 %v1065
        %v1579 = vunpack.c.l.b16 %v1066
        %v1580 = vunpack.c.l.b16 %v1067
        %v1581 = vunpack.c.l.b16 %v1068
        %v1582 = vunpack.c.l.b16 %v1069
        %v1583 = vunpack.c.l.b16 %v1070
        %v1584 = vunpack.c.l.b16 %v1071
        %v1585 = vunpack.c.l.b16 %v1072
        %v1586 = vunpack.c.l.b16 %v1073
        %v1587 = vunpack.c.l.b16 %v1074
        %v1588 = vunpack.c.l.b16 %v1075
        %v1589 = vunpack.c.l.b16 %v1076
        %v1590 = vunpack.c.l.b16 %v1077
        %v1591 = vunpack.c.l.b16 %v1078
        %v1592 = vunpack.c.l.b16 %v1079
        %v1593 = vunpack.c.l.b16 %v1080
        %v1594 = vunpack.c.l.b16 %v1081
        %v1595 = vunpack.c.l.b16 %v1082
        %v1596 = vunpack.c.l.b16 %v1083
        %v1597 = vunpack.c.l.b16 %v1084
        %v1598 = vunpack.c.l.b16 %v1085
        %v1599 = vunpack.c.l.b16 %v1086
        %v1600 = vunpack.c.l.b16 %v1087
        %v1601 = vunpack.c.l.b16 %v1088
        %v1602 = vunpack.c.l.b16 %v1089
        %v1603 = vunpack.c.l.b16 %v1090
        %v1604 = vunpack.c.l.b16 %v1091
        %v1605 = vunpack.c.l.b16 %v1092
        %v1606 = vunpack.c.l.b16 %v1093
        %v1607 = vunpack.c.l.b16 %v1094
        %v1608 = vunpack.c.l.b16 %v1095
        %v1609 = vunpack.c.l.b16 %v1096
        %v1610 = vunpack.c.l.b16 %v1097
        %v1611 = vunpack.c.l.b16 %v1098
        %v1612 = vunpack.c.l.b16 %v1099
        %v1613 = vunpack.c.l.b16 %v1100
        %v1614 = vunpack.c.l.b16 %v1101
        %v1615 = vunpack.c.l.b16 %v1102
        %v1616 = vunpack.c.l.b16 %v1103
        %v1617 = vunpack.c.l.b16 %v1104
        %v1618 = vunpack.c.l.b16 %v1105
        %v1619 = vunpack.c.l.b16 %v1106
        %v1620 = vunpack.c.l.b16 %v1107
        %v1621 = vunpack.c.l.b16 %v1108
        %v1622 = vunpack.c.l.b16 %v1109
        %v1623 = vunpack.c.l.b16 %v1110
        %v1624 = vunpack.c.l.b16 %v1111
        %v1625 = vunpack.c.l.b16 %v1112
        %v1626 = vunpack.c.l.b16 %v1113
        %v1627 = vunpack.c.l.b16 %v1114
        %v1628 = vunpack.c.l.b16 %v1115
        %v1629 = vunpack.c.l.b16 %v1116
        %v1630 = vunpack.c.l.b16 %v1117
        %v1631 = vunpack.c.l.b16 %v1118
        %v1632 = vunpack.c.l.b16 %v1119
        %v1633 = vunpack.c.l.b16 %v1120
        %v1634 = vunpack.c.l.b16 %v1121
        %v1635 = vunpack.c.l.b16 %v1122
        %v1636 = vunpack.c.l.b16 %v1123
        %v1637 = vunpack.c.l.b16 %v1124
        %v1638 = vunpack.c.l.b16 %v1125
        %v1639 = vunpack.c.l.b16 %v1126
        %v1640 = vunpack.c.l.b16 %v1127
        %v1641 = vunpack.c.l.b16 %v1128
        %v1642 = vunpack.c.l.b16 %v1129
        %v1643 = vunpack.c.l.b16 %v1130
        %v1644 = vunpack.c.l.b16 %v1131
        %v1645 = vunpack.c.l.b16 %v1132
        %v1646 = vunpack.c.l.b16 %v1133
        %v1647 = vunpack.c.l.b16 %v1134
        %v1648 = vunpack.c.l.b16 %v1135
        %v1649 = vunpack.c.l.b16 %v1136
        %v1650 = vunpack.c.l.b16 %v1137
        %v1651 = vunpack.c.l.b16 %v1138
        %v1652 = vunpack.c.l.b16 %v1139
        %v1653 = vunpack.c.l.b16 %v1140
        %v1654 = vunpack.c.l.b16 %v1141
        %v1655 = vunpack.c.l.b16 %v1142
        %v1656 = vunpack.c.l.b16 %v1143
        %v1657 = vunpack.c.l.b16 %v1144
        %v1658 = vunpack.c.l.b16 %v1145
        %v1659 = vunpack.c.l.b16 %v1146
        %v1660 = vunpack.c.l.b16 %v1147
        %v1661 = vunpack.c.l.b16 %v1148
        %v1662 = vunpack.c.l.b16 %v1149
        %v1663 = vunpack.c.l.b16 %v1150
        %v1664 = vunpack.c.l.b16 %v1151
        %v1665 = vunpack.c.l.b16 %v1152
        %v1666 = vunpack.c.l.b16 %v1153
        %v1667 = vunpack.c.l.b16 %v1154
        %v1668 = vunpack.c.l.b16 %v1155
        %v1669 = vunpack.c.l.b16 %v1156
        %v1670 = vunpack.c.l.b16 %v1157
        %v1671 = vunpack.c.l.b16 %v1158
        %v1672 = vunpack.c.l.b16 %v1159
        %v1673 = vunpack.c.l.b16 %v1160
        %v1674 = vunpack.c.l.b16 %v1161
        %v1675 = vunpack.c.l.b16 %v1162
        %v1676 = vunpack.c.l.b16 %v1163
        %v1677 = vunpack.c.l.b16 %v1164
        %v1678 = vunpack.c.l.b16 %v1165
        %v1679 = vunpack.c.l.b16 %v1166
        %v1680 = vunpack.c.l.b16 %v1167
        %v1681 = vunpack.c.l.b16 %v1168
        %v1682 = vunpack.c.l.b16 %v1169
        %v1683 = vunpack.c.l.b16 %v1170
        %v1684 = vunpack.c.l.b16 %v1171
        %v1685 = vunpack.c.l.b16 %v1172
        %v1686 = vunpack.c.l.b16 %v1173
        %v1687 = vunpack.c.l.b16 %v1174
        %v1688 = vunpack.c.l.b16 %v1175
        %v1689 = vunpack.c.l.b16 %v1176
        %v1690 = vunpack.c.l.b16 %v1177
        %v1691 = vunpack.c.l.b16 %v1178
        %v1692 = vunpack.c.l.b16 %v1179
        %v1693 = vunpack.c.l.b16 %v1180
        %v1694 = vunpack.c.l.b16 %v1181
        %v1695 = vunpack.c.l.b16 %v1182
        %v1696 = vunpack.c.l.b16 %v1183
        %v1697 = vunpack.c.l.b16 %v1184
        %v1698 = vunpack.c.l.b16 %v1185
        %v1699 = vunpack.c.l.b16 %v1186
        %v1700 = vunpack.c.l.b16 %v1187
        %v1701 = vunpack.c.l.b16 %v1188
        %v1702 = vunpack.c.l.b16 %v1189
        %v1703 = vunpack.c.l.b16 %v1190
        %v1704 = vunpack.c.l.b16 %v1191
        %v1705 = vunpack.c.l.b16 %v1192
        %v1706 = vunpack.c.l.b16 %v1193
        %v1707 = vunpack.c.l.b16 %v1194
        %v1708 = vunpack.c.l.b16 %v1195
        %v1709 = vunpack.c.l.b16 %v1196
        %v1710 = vunpack.c.l.b16 %v1197
        %v1711 = vunpack.c.l.b16 %v1198
        %v1712 = vunpack.c.l.b16 %v1199
        %v1713 = vunpack.c.l.b16 %v1200
        %v1714 = vunpack.c.l.b16 %v1201
        %v1715 = vunpack.c.l.b16 %v1202
        %v1716 = vunpack.c.l.b16 %v1203
        %v1717 = vunpack.c.l.b16 %v1204
        %v1718 = vunpack.c.l.b16 %v1205
        %v1719 = vunpack.c.l.b16 %v1206
        %v1720 = vunpack.c.l.b16 %v1207
        %v1721 = vunpack.c.l.b16 %v1208
        %v1722 = vunpack.c.l.b16 %v1209
        %v1723 = vunpack.c.l.b16 %v1210
        %v1724 = vunpack.c.l.b16 %v1211
        %v1725 = vunpack.c.l.b16 %v1212
        %v1726 = vunpack.c.l.b16 %v1213
        %v1727 = vunpack.c.l.b16 %v1214
        %v1728 = vunpack.c.l.b16 %v1215
        %v1729 = vunpack.c.l.b16 %v1216
        %v1730 = vunpack.c.l.b16 %v1217
        %v1731 = vunpack.c.l.b16 %v1218
        %v1732 = vunpack.c.l.b16 %v1219
        %v1733 = vunpack.c.l.b16 %v1220
        %v1734 = vunpack.c.l.b16 %v1221
        %v1735 = vpack.c.b16 %v1480, %v1479
        %v1736 = vpack.c.b16 %v1482, %v1481
        %v1737 = vpack.c.b16 %v1484, %v1483
        %v1738 = vpack.c.b16 %v1486, %v1485
        %v1739 = vpack.c.b16 %v1488, %v1487
        %v1740 = vpack.c.b16 %v1490, %v1489
        %v1741 = vpack.c.b16 %v1492, %v1491
        %v1742 = vpack.c.b16 %v1494, %v1493
        %v1743 = vpack.c.b16 %v1496, %v1495
        %v1744 = vpack.c.b16 %v1498, %v1497
        %v1745 = vpack.c.b16 %v1500, %v1499
        %v1746 = vpack.c.b16 %v1502, %v1501
        %v1747 = vpack.c.b16 %v1504, %v1503
        %v1748 = vpack.c.b16 %v1506, %v1505
        %v1749 = vpack.c.b16 %v1508, %v1507
        %v1750 = vpack.c.b16 %v1510, %v1509
        %v1751 = vpack.c.b16 %v1512, %v1511
        %v1752 = vpack.c.b16 %v1514, %v1513
        %v1753 = vpack.c.b16 %v1516, %v1515
        %v1754 = vpack.c.b16 %v1518, %v1517
        %v1755 = vpack.c.b16 %v1520, %v1519
        %v1756 = vpack.c.b16 %v1522, %v1521
        %v1757 = vpack.c.b16 %v1524, %v1523
        %v1758 = vpack.c.b16 %v1526, %v1525
        %v1759 = vpack.c.b16 %v1528, %v1527
        %v1760 = vpack.c.b16 %v1530, %v1529
        %v1761 = vpack.c.b16 %v1532, %v1531
        %v1762 = vpack.c.b16 %v1534, %v1533
        %v1763 = vpack.c.b16 %v1536, %v1535
        %v1764 = vpack.c.b16 %v1538, %v1537
        %v1765 = vpack.c.b16 %v1540, %v1539
        %v1766 = vpack.c.b16 %v1542, %v1541
        %v1767 = vpack.c.b16 %v1544, %v1543
        %v1768 = vpack.c.b16 %v1546, %v1545
        %v1769 = vpack.c.b16 %v1548, %v1547
        %v1770 = vpack.c.b16 %v1550, %v1549
        %v1771 = vpack.c.b16 %v1552, %v1551
        %v1772 = vpack.c.b16 %v1554, %v1553
        %v1773 = vpack.c.b16 %v1556, %v1555
        %v1774 = vpack.c.b16 %v1558, %v1557
        %v1775 = vpack.c.b16 %v1560, %v1559
        %v1776 = vpack.c.b16 %v1562, %v1561
        %v1777 = vpack.c.b16 %v1564, %v1563
        %v1778 = vpack.c.b16 %v1566, %v1565
        %v1779 = vpack.c.b16 %v1568, %v1567
        %v1780 = vpack.c.b16 %v1570, %v1569
        %v1781 = vpack.c.b16 %v1572, %v1571
        %v1782 = vpack.c.b16 %v1574, %v1573
        %v1783 = vpack.c.b16 %v1576, %v1575
        %v1784 = vpack.c.b16 %v1578, %v1577
        %v1785 = vpack.c.b16 %v1580, %v1579
        %v1786 = vpack.c.b16 %v1582, %v1581
        %v1787 = vpack.c.b16 %v1584, %v1583
        %v1788 = vpack.c.b16 %v1586, %v1585
        %v1789 = vpack.c.b16 %v1588, %v1587
        %v1790 = vpack.c.b16 %v1590, %v1589
        %v1791 = vpack.c.b16 %v1592, %v1591
        %v1792 = vpack.c.b16 %v1594, %v1593
        %v1793 = vpack.c.b16 %v1596, %v1595
        %v1794 = vpack.c.b16 %v1598, %v1597
        %v1795 = vpack.c.b16 %v1600, %v1599
        %v1796 = vpack.c.b16 %v1602, %v1601
        %v1797 = vpack.c.b16 %v1604, %v1603
        %v1798 = vpack.c.b16 %v1606, %v1605
        %v1799 = vpack.c.b16 %v1608, %v1607
        %v1800 = vpack.c.b16 %v1610, %v1609
        %v1801 = vpack.c.b16 %v1612, %v1611
        %v1802 = vpack.c.b16 %v1614, %v1613
        %v1803 = vpack.c.b16 %v1616, %v1615
        %v1804 = vpack.c.b16 %v1618, %v1617
        %v1805 = vpack.c.b16 %v1620, %v1619
        %v1806 = vpack.c.b16 %v1622, %v1621
        %v1807 = vpack.c.b16 %v1624, %v1623
        %v1808 = vpack.c.b16 %v1626, %v1625
        %v1809 = vpack.c.b16 %v1628, %v1627
        %v1810 = vpack.c.b16 %v1630, %v1629
        %v1811 = vpack.c.b16 %v1632, %v1631
        %v1812 = vpack.c.b16 %v1634, %v1633
        %v1813 = vpack.c.b16 %v1636, %v1635
        %v1814 = vpack.c.b16 %v1638, %v1637
        %v1815 = vpack.c.b16 %v1640, %v1639
        %v1816 = vpack.c.b16 %v1642, %v1641
        %v1817 = vpack.c.b16 %v1644, %v1643
        %v1818 = vpack.c.b16 %v1646, %v1645
        %v1819 = vpack.c.b16 %v1648, %v1647
        %v1820 = vpack.c.b16 %v1650, %v1649
        %v1821 = vpack.c.b16 %v1652, %v1651
        %v1822 = vpack.c.b16 %v1654, %v1653
        %v1823 = vpack.c.b16 %v1656, %v1655
        %v1824 = vpack.c.b16 %v1658, %v1657
        %v1825 = vpack.c.b16 %v1660, %v1659
        %v1826 = vpack.c.b16 %v1662, %v1661
        %v1827 = vpack.c.b16 %v1664, %v1663
        %v1828 = vpack.c.b16 %v1666, %v1665
        %v1829 = vpack.c.b16 %v1668, %v1667
        %v1830 = vpack.c.b16 %v1670, %v1669
        %v1831 = vpack.c.b16 %v1672, %v1671
        %v1832 = vpack.c.b16 %v1674, %v1673
        %v1833 = vpack.c.b16 %v1676, %v1675
        %v1834 = vpack.c.b16 %v1678, %v1677
        %v1835 = vpack.c.b16 %v1680, %v1679
        %v1836 = vpack.c.b16 %v1682, %v1681
        %v1837 = vpack.c.b16 %v1684, %v1683
        %v1838 = vpack.c.b16 %v1686, %v1685
        %v1839 = vpack.c.b16 %v1688, %v1687
        %v1840 = vpack.c.b16 %v1690, %v1689
        %v1841 = vpack.c.b16 %v1692, %v1691
        %v1842 = vpack.c.b16 %v1694, %v1693
        %v1843 = vpack.c.b16 %v1696, %v1695
        %v1844 = vpack.c.b16 %v1698, %v1697
        %v1845 = vpack.c.b16 %v1700, %v1699
        %v1846 = vpack.c.b16 %v1702, %v1701
        %v1847 = vpack.c.b16 %v1704, %v1703
        %v1848 = vpack.c.b16 %v1706, %v1705
        %v1849 = vpack.c.b16 %v1708, %v1707
        %v1850 = vpack.c.b16 %v1710, %v1709
        %v1851 = vpack.c.b16 %v1712, %v1711
        %v1852 = vpack.c.b16 %v1714, %v1713
        %v1853 = vpack.c.b16 %v1716, %v1715
        %v1854 = vpack.c.b16 %v1718, %v1717
        %v1855 = vpack.c.b16 %v1720, %v1719
        %v1856 = vpack.c.b16 %v1722, %v1721
        %v1857 = vpack.c.b16 %v1724, %v1723
        %v1858 = vpack.c.b16 %v1726, %v1725
        %v1859 = vpack.c.b16 %v1728, %v1727
        %v1860 = vpack.c.b16 %v1730, %v1729
        %v1861 = vpack.c.b16 %v1732, %v1731
        %v1862 = vpack.c.b16 %v1734, %v1733
        %1991 = vmatprep.subr.bf16.mxu0 0
        %1992 = vmatpush1.bf16.msra.mxu0 %v1735
        %1993 = vmatprep.subr.bf16.mxu0 0
        %1994 = vmatpush1.bf16.msra.mxu0 %v1736
        %1995 = vmatprep.subr.bf16.mxu0 0
        %1996 = vmatpush1.bf16.msra.mxu0 %v1737
        %1997 = vmatprep.subr.bf16.mxu0 0
        %1998 = vmatpush1.bf16.msra.mxu0 %v1738
        %1999 = vmatprep.subr.bf16.mxu0 0
        %2000 = vmatpush1.bf16.msra.mxu0 %v1739
        %2001 = vmatprep.subr.bf16.mxu0 0
        %2002 = vmatpush1.bf16.msra.mxu0 %v1740
        %2003 = vmatprep.subr.bf16.mxu0 0
        %2004 = vmatpush1.bf16.msra.mxu0 %v1741
        %2005 = vmatprep.subr.bf16.mxu0 0
        %2006 = vmatpush1.bf16.msra.mxu0 %v1742
        %2007 = vmatprep.subr.bf16.mxu0 0
        %2008 = vmatpush1.bf16.msra.mxu0 %v1743
        %2009 = vmatprep.subr.bf16.mxu0 0
        %2010 = vmatpush1.bf16.msra.mxu0 %v1744
        %2011 = vmatprep.subr.bf16.mxu0 0
        %2012 = vmatpush1.bf16.msra.mxu0 %v1745
        %2013 = vmatprep.subr.bf16.mxu0 0
        %2014 = vmatpush1.bf16.msra.mxu0 %v1746
        %2015 = vmatprep.subr.bf16.mxu0 0
        %2016 = vmatpush1.bf16.msra.mxu0 %v1747
        %2017 = vmatprep.subr.bf16.mxu0 0
        %2018 = vmatpush1.bf16.msra.mxu0 %v1748
        %2019 = vmatprep.subr.bf16.mxu0 0
        %2020 = vmatpush1.bf16.msra.mxu0 %v1749
        %2021 = vmatprep.subr.bf16.mxu0 0
        %2022 = vmatpush1.bf16.msra.mxu0 %v1750
        %2023 = vmatprep.mubr.bf16.mxu0 %v951
        %2024 = vmatmul.mubr.bf16.gmra.mrb[0].mxu0 %v950
        %v2025 = vpop.f32.mrb[0].mxu0
        %v2026 = vadd.f32 %v1222, %v2025
        %v2027 = vpop.f32.mrb[0].mxu0
        %v2028 = vpop.f32.mrb[0].mxu0
        %v2029 = vpop.f32.mrb[0].mxu0
        %2030 = vdwg.mxu0
        %2031 = vmatprep.subr.bf16.mxu0 0
        %2032 = vmatpush1.bf16.msra.mxu0 %v1751
        %2033 = vmatprep.subr.bf16.mxu0 0
        %2034 = vmatpush1.bf16.msra.mxu0 %v1752
        %2035 = vmatprep.subr.bf16.mxu0 0
        %2036 = vmatpush1.bf16.msra.mxu0 %v1753
        %2037 = vmatprep.subr.bf16.mxu0 0
        %2038 = vmatpush1.bf16.msra.mxu0 %v1754
        %2039 = vmatprep.subr.bf16.mxu0 0
        %2040 = vmatpush1.bf16.msra.mxu0 %v1755
        %2041 = vmatprep.subr.bf16.mxu0 0
        %2042 = vmatpush1.bf16.msra.mxu0 %v1756
        %2043 = vmatprep.subr.bf16.mxu0 0
        %2044 = vmatpush1.bf16.msra.mxu0 %v1757
        %2045 = vmatprep.subr.bf16.mxu0 0
        %2046 = vmatpush1.bf16.msra.mxu0 %v1758
        %2047 = vmatprep.subr.bf16.mxu0 0
        %2048 = vmatpush1.bf16.msra.mxu0 %v1759
        %2049 = vmatprep.subr.bf16.mxu0 0
        %2050 = vmatpush1.bf16.msra.mxu0 %v1760
        %2051 = vmatprep.subr.bf16.mxu0 0
        %2052 = vmatpush1.bf16.msra.mxu0 %v1761
        %2053 = vmatprep.subr.bf16.mxu0 0
        %2054 = vmatpush1.bf16.msra.mxu0 %v1762
        %2055 = vmatprep.subr.bf16.mxu0 0
        %2056 = vmatpush1.bf16.msra.mxu0 %v1763
        %2057 = vmatprep.subr.bf16.mxu0 0
        %2058 = vmatpush1.bf16.msra.mxu0 %v1764
        %2059 = vmatprep.subr.bf16.mxu0 0
        %2060 = vmatpush1.bf16.msra.mxu0 %v1765
        %2061 = vmatprep.subr.bf16.mxu0 0
        %2062 = vmatpush1.bf16.msra.mxu0 %v1766
        %2063 = vmatprep.mubr.bf16.mxu0 %v953
        %2064 = vmatmul.mubr.bf16.gmra.mrb[0].mxu0 %v952
        %v2065 = vpop.f32.mrb[0].mxu0
        %v2066 = vadd.f32 %v2026, %v2065
        %v2067 = vpop.f32.mrb[0].mxu0
        %v2068 = vpop.f32.mrb[0].mxu0
        %v2069 = vpop.f32.mrb[0].mxu0
        %2070 = vdwg.mxu0
        %2071 = vmatprep.subr.bf16.mxu0 0
        %2072 = vmatpush1.bf16.msra.mxu0 %v1767
        %2073 = vmatprep.subr.bf16.mxu0 0
        %2074 = vmatpush1.bf16.msra.mxu0 %v1768
        %2075 = vmatprep.subr.bf16.mxu0 0
        %2076 = vmatpush1.bf16.msra.mxu0 %v1769
        %2077 = vmatprep.subr.bf16.mxu0 0
        %2078 = vmatpush1.bf16.msra.mxu0 %v1770
        %2079 = vmatprep.subr.bf16.mxu0 0
        %2080 = vmatpush1.bf16.msra.mxu0 %v1771
        %2081 = vmatprep.subr.bf16.mxu0 0
        %2082 = vmatpush1.bf16.msra.mxu0 %v1772
        %2083 = vmatprep.subr.bf16.mxu0 0
        %2084 = vmatpush1.bf16.msra.mxu0 %v1773
        %2085 = vmatprep.subr.bf16.mxu0 0
        %2086 = vmatpush1.bf16.msra.mxu0 %v1774
        %2087 = vmatprep.subr.bf16.mxu0 0
        %2088 = vmatpush1.bf16.msra.mxu0 %v1775
        %2089 = vmatprep.subr.bf16.mxu0 0
        %2090 = vmatpush1.bf16.msra.mxu0 %v1776
        %2091 = vmatprep.subr.bf16.mxu0 0
        %2092 = vmatpush1.bf16.msra.mxu0 %v1777
        %2093 = vmatprep.subr.bf16.mxu0 0
        %2094 = vmatpush1.bf16.msra.mxu0 %v1778
        %2095 = vmatprep.subr.bf16.mxu0 0
        %2096 = vmatpush1.bf16.msra.mxu0 %v1779
        %2097 = vmatprep.subr.bf16.mxu0 0
        %2098 = vmatpush1.bf16.msra.mxu0 %v1780
        %2099 = vmatprep.subr.bf16.mxu0 0
        %2100 = vmatpush1.bf16.msra.mxu0 %v1781
        %2101 = vmatprep.subr.bf16.mxu0 0
        %2102 = vmatpush1.bf16.msra.mxu0 %v1782
        %2103 = vmatprep.mubr.bf16.mxu0 %v955
        %2104 = vmatmul.mubr.bf16.gmra.mrb[0].mxu0 %v954
        %v2105 = vpop.f32.mrb[0].mxu0
        %v2106 = vadd.f32 %v2066, %v2105
        %v2107 = vpop.f32.mrb[0].mxu0
        %v2108 = vpop.f32.mrb[0].mxu0
        %v2109 = vpop.f32.mrb[0].mxu0
        %2110 = vdwg.mxu0
        %2111 = vmatprep.subr.bf16.mxu0 0
        %2112 = vmatpush1.bf16.msra.mxu0 %v1783
        %2113 = vmatprep.subr.bf16.mxu0 0
        %2114 = vmatpush1.bf16.msra.mxu0 %v1784
        %2115 = vmatprep.subr.bf16.mxu0 0
        %2116 = vmatpush1.bf16.msra.mxu0 %v1785
        %2117 = vmatprep.subr.bf16.mxu0 0
        %2118 = vmatpush1.bf16.msra.mxu0 %v1786
        %2119 = vmatprep.subr.bf16.mxu0 0
        %2120 = vmatpush1.bf16.msra.mxu0 %v1787
        %2121 = vmatprep.subr.bf16.mxu0 0
        %2122 = vmatpush1.bf16.msra.mxu0 %v1788
        %2123 = vmatprep.subr.bf16.mxu0 0
        %2124 = vmatpush1.bf16.msra.mxu0 %v1789
        %2125 = vmatprep.subr.bf16.mxu0 0
        %2126 = vmatpush1.bf16.msra.mxu0 %v1790
        %2127 = vmatprep.subr.bf16.mxu0 0
        %2128 = vmatpush1.bf16.msra.mxu0 %v1791
        %2129 = vmatprep.subr.bf16.mxu0 0
        %2130 = vmatpush1.bf16.msra.mxu0 %v1792
        %2131 = vmatprep.subr.bf16.mxu0 0
        %2132 = vmatpush1.bf16.msra.mxu0 %v1793
        %2133 = vmatprep.subr.bf16.mxu0 0
        %2134 = vmatpush1.bf16.msra.mxu0 %v1794
        %2135 = vmatprep.subr.bf16.mxu0 0
        %2136 = vmatpush1.bf16.msra.mxu0 %v1795
        %2137 = vmatprep.subr.bf16.mxu0 0
        %2138 = vmatpush1.bf16.msra.mxu0 %v1796
        %2139 = vmatprep.subr.bf16.mxu0 0
        %2140 = vmatpush1.bf16.msra.mxu0 %v1797
        %2141 = vmatprep.subr.bf16.mxu0 0
        %2142 = vmatpush1.bf16.msra.mxu0 %v1798
        %2143 = vmatprep.mubr.bf16.mxu0 %v957
        %2144 = vmatmul.mubr.bf16.gmra.mrb[0].mxu0 %v956
        %v2145 = vpop.f32.mrb[0].mxu0
        %v2146 = vadd.f32 %v2106, %v2145
        %v2147 = vpop.f32.mrb[0].mxu0
        %v2148 = vpop.f32.mrb[0].mxu0
        %v2149 = vpop.f32.mrb[0].mxu0
        %2150 = vdwg.mxu0
        %2151 = vmatprep.subr.bf16.mxu0 0
        %2152 = vmatpush1.bf16.msra.mxu0 %v1799
        %2153 = vmatprep.subr.bf16.mxu0 0
        %2154 = vmatpush1.bf16.msra.mxu0 %v1800
        %2155 = vmatprep.subr.bf16.mxu0 0
        %2156 = vmatpush1.bf16.msra.mxu0 %v1801
        %2157 = vmatprep.subr.bf16.mxu0 0
        %2158 = vmatpush1.bf16.msra.mxu0 %v1802
        %2159 = vmatprep.subr.bf16.mxu0 0
        %2160 = vmatpush1.bf16.msra.mxu0 %v1803
        %2161 = vmatprep.subr.bf16.mxu0 0
        %2162 = vmatpush1.bf16.msra.mxu0 %v1804
        %2163 = vmatprep.subr.bf16.mxu0 0
        %2164 = vmatpush1.bf16.msra.mxu0 %v1805
        %2165 = vmatprep.subr.bf16.mxu0 0
        %2166 = vmatpush1.bf16.msra.mxu0 %v1806
        %2167 = vmatprep.subr.bf16.mxu0 0
        %2168 = vmatpush1.bf16.msra.mxu0 %v1807
        %2169 = vmatprep.subr.bf16.mxu0 0
        %2170 = vmatpush1.bf16.msra.mxu0 %v1808
        %2171 = vmatprep.subr.bf16.mxu0 0
        %2172 = vmatpush1.bf16.msra.mxu0 %v1809
        %2173 = vmatprep.subr.bf16.mxu0 0
        %2174 = vmatpush1.bf16.msra.mxu0 %v1810
        %2175 = vmatprep.subr.bf16.mxu0 0
        %2176 = vmatpush1.bf16.msra.mxu0 %v1811
        %2177 = vmatprep.subr.bf16.mxu0 0
        %2178 = vmatpush1.bf16.msra.mxu0 %v1812
        %2179 = vmatprep.subr.bf16.mxu0 0
        %2180 = vmatpush1.bf16.msra.mxu0 %v1813
        %2181 = vmatprep.subr.bf16.mxu0 0
        %2182 = vmatpush1.bf16.msra.mxu0 %v1814
        %2183 = vmatprep.mubr.bf16.mxu0 %v959
        %2184 = vmatmul.mubr.bf16.gmra.mrb[0].mxu0 %v958
        %v2185 = vpop.f32.mrb[0].mxu0
        %v2186 = vadd.f32 %v2146, %v2185
        %v2187 = vpop.f32.mrb[0].mxu0
        %v2188 = vpop.f32.mrb[0].mxu0
        %v2189 = vpop.f32.mrb[0].mxu0
        %2190 = vdwg.mxu0
        %2191 = vmatprep.subr.bf16.mxu0 0
        %2192 = vmatpush1.bf16.msra.mxu0 %v1815
        %2193 = vmatprep.subr.bf16.mxu0 0
        %2194 = vmatpush1.bf16.msra.mxu0 %v1816
        %2195 = vmatprep.subr.bf16.mxu0 0
        %2196 = vmatpush1.bf16.msra.mxu0 %v1817
        %2197 = vmatprep.subr.bf16.mxu0 0
        %2198 = vmatpush1.bf16.msra.mxu0 %v1818
        %2199 = vmatprep.subr.bf16.mxu0 0
        %2200 = vmatpush1.bf16.msra.mxu0 %v1819
        %2201 = vmatprep.subr.bf16.mxu0 0
        %2202 = vmatpush1.bf16.msra.mxu0 %v1820
        %2203 = vmatprep.subr.bf16.mxu0 0
        %2204 = vmatpush1.bf16.msra.mxu0 %v1821
        %2205 = vmatprep.subr.bf16.mxu0 0
        %2206 = vmatpush1.bf16.msra.mxu0 %v1822
        %2207 = vmatprep.subr.bf16.mxu0 0
        %2208 = vmatpush1.bf16.msra.mxu0 %v1823
        %2209 = vmatprep.subr.bf16.mxu0 0
        %2210 = vmatpush1.bf16.msra.mxu0 %v1824
        %2211 = vmatprep.subr.bf16.mxu0 0
        %2212 = vmatpush1.bf16.msra.mxu0 %v1825
        %2213 = vmatprep.subr.bf16.mxu0 0
        %2214 = vmatpush1.bf16.msra.mxu0 %v1826
        %2215 = vmatprep.subr.bf16.mxu0 0
        %2216 = vmatpush1.bf16.msra.mxu0 %v1827
        %2217 = vmatprep.subr.bf16.mxu0 0
        %2218 = vmatpush1.bf16.msra.mxu0 %v1828
        %2219 = vmatprep.subr.bf16.mxu0 0
        %2220 = vmatpush1.bf16.msra.mxu0 %v1829
        %2221 = vmatprep.subr.bf16.mxu0 0
        %2222 = vmatpush1.bf16.msra.mxu0 %v1830
        %2223 = vmatprep.mubr.bf16.mxu0 %v961
        %2224 = vmatmul.mubr.bf16.gmra.mrb[0].mxu0 %v960
        %v2225 = vpop.f32.mrb[0].mxu0
        %v2226 = vadd.f32 %v2186, %v2225
        %v2227 = vpop.f32.mrb[0].mxu0
        %v2228 = vpop.f32.mrb[0].mxu0
        %v2229 = vpop.f32.mrb[0].mxu0
        %2230 = vdwg.mxu0
        %2231 = vmatprep.subr.bf16.mxu0 0
        %2232 = vmatpush1.bf16.msra.mxu0 %v1831
        %2233 = vmatprep.subr.bf16.mxu0 0
        %2234 = vmatpush1.bf16.msra.mxu0 %v1832
        %2235 = vmatprep.subr.bf16.mxu0 0
        %2236 = vmatpush1.bf16.msra.mxu0 %v1833
        %2237 = vmatprep.subr.bf16.mxu0 0
        %2238 = vmatpush1.bf16.msra.mxu0 %v1834
        %2239 = vmatprep.subr.bf16.mxu0 0
        %2240 = vmatpush1.bf16.msra.mxu0 %v1835
        %2241 = vmatprep.subr.bf16.mxu0 0
        %2242 = vmatpush1.bf16.msra.mxu0 %v1836
        %2243 = vmatprep.subr.bf16.mxu0 0
        %2244 = vmatpush1.bf16.msra.mxu0 %v1837
        %2245 = vmatprep.subr.bf16.mxu0 0
        %2246 = vmatpush1.bf16.msra.mxu0 %v1838
        %2247 = vmatprep.subr.bf16.mxu0 0
        %2248 = vmatpush1.bf16.msra.mxu0 %v1839
        %2249 = vmatprep.subr.bf16.mxu0 0
        %2250 = vmatpush1.bf16.msra.mxu0 %v1840
        %2251 = vmatprep.subr.bf16.mxu0 0
        %2252 = vmatpush1.bf16.msra.mxu0 %v1841
        %2253 = vmatprep.subr.bf16.mxu0 0
        %2254 = vmatpush1.bf16.msra.mxu0 %v1842
        %2255 = vmatprep.subr.bf16.mxu0 0
        %2256 = vmatpush1.bf16.msra.mxu0 %v1843
        %2257 = vmatprep.subr.bf16.mxu0 0
        %2258 = vmatpush1.bf16.msra.mxu0 %v1844
        %2259 = vmatprep.subr.bf16.mxu0 0
        %2260 = vmatpush1.bf16.msra.mxu0 %v1845
        %2261 = vmatprep.subr.bf16.mxu0 0
        %2262 = vmatpush1.bf16.msra.mxu0 %v1846
        %2263 = vmatprep.mubr.bf16.mxu0 %v963
        %2264 = vmatmul.mubr.bf16.gmra.mrb[0].mxu0 %v962
        %v2265 = vpop.f32.mrb[0].mxu0
        %v2266 = vadd.f32 %v2226, %v2265
        %v2267 = vpop.f32.mrb[0].mxu0
        %v2268 = vpop.f32.mrb[0].mxu0
        %v2269 = vpop.f32.mrb[0].mxu0
        %2270 = vdwg.mxu0
        %2271 = vmatprep.subr.bf16.mxu0 0
        %2272 = vmatpush1.bf16.msra.mxu0 %v1847
        %2273 = vmatprep.subr.bf16.mxu0 0
        %2274 = vmatpush1.bf16.msra.mxu0 %v1848
        %2275 = vmatprep.subr.bf16.mxu0 0
        %2276 = vmatpush1.bf16.msra.mxu0 %v1849
        %2277 = vmatprep.subr.bf16.mxu0 0
        %2278 = vmatpush1.bf16.msra.mxu0 %v1850
        %2279 = vmatprep.subr.bf16.mxu0 0
        %2280 = vmatpush1.bf16.msra.mxu0 %v1851
        %2281 = vmatprep.subr.bf16.mxu0 0
        %2282 = vmatpush1.bf16.msra.mxu0 %v1852
        %2283 = vmatprep.subr.bf16.mxu0 0
        %2284 = vmatpush1.bf16.msra.mxu0 %v1853
        %2285 = vmatprep.subr.bf16.mxu0 0
        %2286 = vmatpush1.bf16.msra.mxu0 %v1854
        %2287 = vmatprep.subr.bf16.mxu0 0
        %2288 = vmatpush1.bf16.msra.mxu0 %v1855
        %2289 = vmatprep.subr.bf16.mxu0 0
        %2290 = vmatpush1.bf16.msra.mxu0 %v1856
        %2291 = vmatprep.subr.bf16.mxu0 0
        %2292 = vmatpush1.bf16.msra.mxu0 %v1857
        %2293 = vmatprep.subr.bf16.mxu0 0
        %2294 = vmatpush1.bf16.msra.mxu0 %v1858
        %2295 = vmatprep.subr.bf16.mxu0 0
        %2296 = vmatpush1.bf16.msra.mxu0 %v1859
        %2297 = vmatprep.subr.bf16.mxu0 0
        %2298 = vmatpush1.bf16.msra.mxu0 %v1860
        %2299 = vmatprep.subr.bf16.mxu0 0
        %2300 = vmatpush1.bf16.msra.mxu0 %v1861
        %2301 = vmatprep.subr.bf16.mxu0 0
        %2302 = vmatpush1.bf16.msra.mxu0 %v1862
        %2303 = vmatprep.mubr.bf16.mxu0 %v965
        %2304 = vmatmul.mubr.bf16.gmra.mrb[0].mxu0 %v964
        %v2305 = vpop.f32.mrb[0].mxu0
        %v2306 = vadd.f32 %v2266, %v2305
        %v2307 = vpop.f32.mrb[0].mxu0
        %v2308 = vpop.f32.mrb[0].mxu0
        %v2309 = vpop.f32.mrb[0].mxu0
        %2310 = vdwg.mxu0
        %v2311 = vpack.c.bf16 %v2306, %v2306
        %v2312 = vld [vmem:[#allocation10] sm:$0xf]
        %v2313 = vld [vmem:[#allocation10 + $0x4] sm:$0xf]
        %v2314 = vld [vmem:[#allocation10 + $0x8] sm:$0xf]
        %v2315 = vld [vmem:[#allocation10 + $0xc] sm:$0xf]
        %v2316 = vld [vmem:[#allocation10 + $0x10] sm:$0xf]
        %v2317 = vld [vmem:[#allocation10 + $0x14] sm:$0xf]
        %v2318 = vld [vmem:[#allocation10 + $0x18] sm:$0xf]
        %v2319 = vld [vmem:[#allocation10 + $0x1c] sm:$0xf]
        %v2320 = vld [vmem:[#allocation10 + $0x20] sm:$0xf]
        %v2321 = vld [vmem:[#allocation10 + $0x24] sm:$0xf]
        %v2322 = vld [vmem:[#allocation10 + $0x28] sm:$0xf]
        %v2323 = vld [vmem:[#allocation10 + $0x2c] sm:$0xf]
        %v2324 = vld [vmem:[#allocation10 + $0x30] sm:$0xf]
        %v2325 = vld [vmem:[#allocation10 + $0x34] sm:$0xf]
        %v2326 = vld [vmem:[#allocation10 + $0x38] sm:$0xf]
        %v2327 = vld [vmem:[#allocation10 + $0x3c] sm:$0xf]
        %v2328 = vld [vmem:[%s8] sm:$0x1]
        %v2345 = vunpack.c.l.b16 %v2312
        %v2346 = vunpack.c.l.b16 %v2313
        %v2347 = vunpack.c.l.b16 %v2314
        %v2348 = vunpack.c.l.b16 %v2315
        %v2349 = vunpack.c.l.b16 %v2316
        %v2350 = vunpack.c.l.b16 %v2317
        %v2351 = vunpack.c.l.b16 %v2318
        %v2352 = vunpack.c.l.b16 %v2319
        %v2353 = vunpack.c.l.b16 %v2320
        %v2354 = vunpack.c.l.b16 %v2321
        %v2355 = vunpack.c.l.b16 %v2322
        %v2356 = vunpack.c.l.b16 %v2323
        %v2357 = vunpack.c.l.b16 %v2324
        %v2358 = vunpack.c.l.b16 %v2325
        %v2359 = vunpack.c.l.b16 %v2326
        %v2360 = vunpack.c.l.b16 %v2327
        %v2361 = vpack.c.b16 %v2346, %v2345
        %v2362 = vpack.c.b16 %v2348, %v2347
        %v2363 = vpack.c.b16 %v2350, %v2349
        %v2364 = vpack.c.b16 %v2352, %v2351
        %v2365 = vpack.c.b16 %v2354, %v2353
        %v2366 = vpack.c.b16 %v2356, %v2355
        %v2367 = vpack.c.b16 %v2358, %v2357
        %v2368 = vpack.c.b16 %v2360, %v2359
        %2377 = vmatprep.subr.bf16.mxu0 0
        %2378 = vmatpush1.bf16.msra.mxu0 %v2361
        %2379 = vmatprep.subr.bf16.mxu0 0
        %2380 = vmatpush1.bf16.msra.mxu0 %v2362
        %2381 = vmatprep.subr.bf16.mxu0 0
        %2382 = vmatpush1.bf16.msra.mxu0 %v2363
        %2383 = vmatprep.subr.bf16.mxu0 0
        %2384 = vmatpush1.bf16.msra.mxu0 %v2364
        %2385 = vmatprep.subr.bf16.mxu0 0
        %2386 = vmatpush1.bf16.msra.mxu0 %v2365
        %2387 = vmatprep.subr.bf16.mxu0 0
        %2388 = vmatpush1.bf16.msra.mxu0 %v2366
        %2389 = vmatprep.subr.bf16.mxu0 0
        %2390 = vmatpush1.bf16.msra.mxu0 %v2367
        %2391 = vmatprep.subr.bf16.mxu0 0
        %2392 = vmatpush1.bf16.msra.mxu0 %v2368
        %2393 = vmatprep.subr.bf16.mxu0 0
        %2394 = vmatpush1.bf16.msra.mxu0 0
        %2395 = vmatprep.subr.bf16.mxu0 0
        %2396 = vmatpush1.bf16.msra.mxu0 0
        %2397 = vmatprep.subr.bf16.mxu0 0
        %2398 = vmatpush1.bf16.msra.mxu0 0
        %2399 = vmatprep.subr.bf16.mxu0 0
        %2400 = vmatpush1.bf16.msra.mxu0 0
        %2401 = vmatprep.subr.bf16.mxu0 0
        %2402 = vmatpush1.bf16.msra.mxu0 0
        %2403 = vmatprep.subr.bf16.mxu0 0
        %2404 = vmatpush1.bf16.msra.mxu0 0
        %2405 = vmatprep.subr.bf16.mxu0 0
        %2406 = vmatpush1.bf16.msra.mxu0 0
        %2407 = vmatprep.subr.bf16.mxu0 0
        %2408 = vmatpush1.bf16.msra.mxu0 0
        %2409 = vmatprep.mubr.bf16.mxu0 0
        %2410 = vmatmul.mubr.bf16.gmra.mrb[0].mxu0 %v2311
        %v2411 = vpop.f32.mrb[0].mxu0
        %v2412 = vadd.f32 %v2328, %v2411
        %v2413 = vpop.f32.mrb[0].mxu0
        %v2414 = vpop.f32.mrb[0].mxu0
        %v2415 = vpop.f32.mrb[0].mxu0
        %2416 = vdwg.mxu0
        %2417 = vst [vmem:[%s407] sm:$0x1] %v2412
        %s2418 = sand.u32 %s230, 1
        %s2419 = scalar_lea.sflag [#allocation4], %s2418
        %s2420 = sand.u32 %s230, 1
        %s2421 = scalar_lea.vmem [#allocation11], %s2420
        // Predicated region
        $region77: #{tpu_custom_call.1} parent=55 // pred_check
          %p2422 = pneg %p240
        $region78: #{tpu_custom_call.1} parent=55 // pred_check_branch
          %2424 = sbr.rel (%p2422) target = $region80
        $region79: #{tpu_custom_call.1} parent=55 // pred_region
          %s2426 = ssub.s32 16, 16
          %2427 = vsyncadd %s2419, %s2426
          %s2428 = smul.addr %s28, 16
          %s2429 = scalar_lea.hbm %s9, %s2428
          %s2431 = sshll.u32 %s2421, 4
          %s2432 = int_to_ptr.vmem [resolvable:$true] %s2431
          %2434 = dma.vmem_to_hbm [thread:$0]  %s2432, 16, %s2429, %s2419
        $region80: #{tpu_custom_call.1} parent=55 // pred_fallthru
          _
      $region56: #{tpu_custom_call.1} parent=5 // pred_fallthru
        _
      %p2435 = scmp.le.s32.totalorder 2, %s23
      // Predicated region
      $region81: #{tpu_custom_call.1} parent=5 // pred_check
        %p2436 = pneg %p2435
      $region82: #{tpu_custom_call.1} parent=5 // pred_check_branch
        %2438 = sbr.rel (%p2436) target = $region84
      $region83: #{tpu_custom_call.1} parent=5 // pred_region
        %s2439 = ssub.s32 %s23, 2
        // Predicated region
        $region85: #{tpu_custom_call.1} parent=83 // pred_check
          %p2440 = pneg %p246
        $region86: #{tpu_custom_call.1} parent=83 // pred_check_branch
          %2442 = sbr.rel (%p2440) target = $region88
        $region87: #{tpu_custom_call.1} parent=83 // pred_region
          %s2443 = sand.u32 %s231, 1
          %s2444 = scalar_lea.sflag [#allocation4], %s2443
          %s2445 = sand.u32 %s231, 1
          %s2446 = scalar_lea.vmem [#allocation11], %s2445
          %2447 = dma.done %s2444, 16
        $region88: #{tpu_custom_call.1} parent=83 // pred_fallthru
          _
      $region84: #{tpu_custom_call.1} parent=5 // pred_fallthru
        _
    $region6: #{tpu_custom_call.1} parent=1 // loop_footer
      %s27 = sadd.s32 1, %s23
    $region7: #{tpu_custom_call.1} parent=1 // loop_footer_branch
      %22 = sbr.rel target = $region3
    $region8: #{tpu_custom_call.1} parent=1 // loop_exit
      _
    %2448 = vsyncpa [#allocation3], 1
    %s2449 = scalar_lea.sflag [#allocation3], 1
    %2450 = vsyncpa %s2449, 1
    %2451 = vsyncpa [#allocation6], 1
    %2452 = vsyncpa [#allocation9], 1
    %2453 = vsyncpa [#allocation4], 1
    %s2454 = scalar_lea.sflag [#allocation4], 1
    %2455 = vsyncpa %s2454, 1

</llo_original>
